<compile_context>
chip_gen: v5e
topology: v5e:2x2
jax: 0.10.0
libtpu: 0.0.40
codegen_flags: <defaults>
</compile_context>

<pallas_src>
import functools

import jax
import jax.numpy as jnp
from jax.experimental import pallas as pl
from jax.experimental.pallas import tpu as pltpu


def find_multiple(n: int, k: int) -> int:
    if n % k == 0:
        return n
    return n + k - n % k


def _chip_config():
    """Generation-aware knobs: VMEM budget, max row tile, #TensorCores, gate dtype."""
    try:
        kind = jax.devices()[0].device_kind.lower()
    except Exception:
        kind = ""
    if "v5" in kind:
        # v5e: 128 MiB VMEM, 1 TC, no bf16 VPU/EUP -> keep gate math in f32.
        return dict(vmem_limit=110 * 1024 * 1024, max_tm=256, n_cores=1, bf16_gate=False)
    if "v6" in kind:
        # v6e: 128 MiB VMEM, 1 TC, bf16 VALU/EUP -> large tm reaches MXU-bound.
        return dict(vmem_limit=110 * 1024 * 1024, max_tm=1024, n_cores=1, bf16_gate=True)
    if "v7" in kind or "7x" in kind:
        # v7x: 64 MiB VMEM per TC, 2 TCs -> cap tm, leave VMEM headroom.
        return dict(vmem_limit=56 * 1024 * 1024, max_tm=512, n_cores=2, bf16_gate=True)
    # Unknown chip: conservative (v7x-like) defaults.
    return dict(vmem_limit=56 * 1024 * 1024, max_tm=512, n_cores=2, bf16_gate=True)


def choose_th(dim: int, hidden_dim: int, w_dtype=jnp.float32) -> int:
    """Pick the hidden-axis tile.  th == hidden_dim collapses the H axis (single pass)."""
    cfg = _chip_config()
    w_it = jnp.dtype(w_dtype).itemsize
    # Double-buffered fused weights must leave room for x/out tiles and f32 temps.
    budget = int(cfg["vmem_limit"] * 0.6)
    full_w = 2 * (dim * 2 * hidden_dim + hidden_dim * dim) * w_it
    if full_w <= budget and hidden_dim % 128 == 0:
        return hidden_dim
    for cand in (512, 256, 128):
        if hidden_dim % cand == 0:
            return cand
    return hidden_dim


def prepare_weights(w1, w3, w2, *, th, dtype=None):
    """One-time weight prep (outside the jitted forward).

    w1, w3: (H, D) PyTorch Linear layout; w2: (D, H).
    Returns:
      w13: (D, 2*H) fused gate/up weight; per H-tile of width 2*th the columns are
           [w1^T tile | w3^T tile] so the kernel does one matmul per tile.
      w2t: (H, D) down-projection in (in, out) layout.
    """
    H, D = w1.shape
    assert H % th == 0, "hidden dim must be a multiple of th"
    n_h = H // th
    w1t = w1.T  # (D, H)
    w3t = w3.T  # (D, H)
    w13 = jnp.concatenate(
        [w1t.reshape(D, n_h, th), w3t.reshape(D, n_h, th)], axis=2
    ).reshape(D, 2 * H)
    w2t = w2.T  # (H, D)
    if dtype is not None:
        w13 = w13.astype(dtype)
        w2t = w2t.astype(dtype)
    return w13, w2t


def _swiglu_gate(h13, th, gate_dtype):
    h1 = h13[:, :th].astype(gate_dtype)   # lane-aligned slice (th % 128 == 0)
    h3 = h13[:, th:].astype(gate_dtype)
    return (h1 * jax.nn.sigmoid(h1)) * h3


def _ffn_single_kernel(x_ref, w13_ref, w2_ref, o_ref, *, th, gate_dtype):
    # Single pass: th == H, no accumulation needed.
    x = x_ref[...].astype(w13_ref.dtype)  # in-kernel cast (no wrapper HBM round-trip)
    h13 = jnp.dot(x, w13_ref[...], preferred_element_type=jnp.float32)
    g = _swiglu_gate(h13, th, gate_dtype)
    y = jnp.dot(g.astype(w2_ref.dtype), w2_ref[...], preferred_element_type=jnp.float32)
    o_ref[...] = y.astype(o_ref.dtype)


def _ffn_stream_kernel_accout(x_ref, w13_ref, w2_ref, o_ref, *, th, gate_dtype):
    # Streamed H axis, f32 output: accumulate directly into the resident output block.
    h = pl.program_id(1)

    @pl.when(h == 0)
    def _():
        o_ref[...] = jnp.zeros_like(o_ref)

    x = x_ref[...].astype(w13_ref.dtype)
    h13 = jnp.dot(x, w13_ref[...], preferred_element_type=jnp.float32)
    g = _swiglu_gate(h13, th, gate_dtype)
    o_ref[...] += jnp.dot(
        g.astype(w2_ref.dtype), w2_ref[...], preferred_element_type=jnp.float32
    )


def _ffn_stream_kernel_scratch(x_ref, w13_ref, w2_ref, o_ref, acc_ref, *, th, gate_dtype):
    # Streamed H axis, non-f32 output: f32 VMEM accumulator, cast at the last step.
    h = pl.program_id(1)

    @pl.when(h == 0)
    def _():
        acc_ref[...] = jnp.zeros_like(acc_ref)

    x = x_ref[...].astype(w13_ref.dtype)
    h13 = jnp.dot(x, w13_ref[...], preferred_element_type=jnp.float32)
    g = _swiglu_gate(h13, th, gate_dtype)
    acc_ref[...] += jnp.dot(
        g.astype(w2_ref.dtype), w2_ref[...], preferred_element_type=jnp.float32
    )

    @pl.when(h == pl.num_programs(1) - 1)
    def _():
        o_ref[...] = acc_ref[...].astype(o_ref.dtype)


@functools.partial(jax.jit, static_argnames=("th", "tm"))
def feed_forward(x, w13, w2t, *, th, tm=None):
    """x: (B, T, D).  w13: (D, 2H) fused weight, w2t: (H, D) — see prepare_weights."""
    B, T, D = x.shape
    H = w13.shape[1] // 2
    assert w13.shape == (D, 2 * H)
    assert w2t.shape == (H, D)
    assert D % 128 == 0, "model dim must be lane-dense (multiple of 128)"
    assert th % 128 == 0 and H % th == 0, "th must be a 128-multiple dividing H"

    cfg = _chip_config()
    M = B * T
    x_it = jnp.dtype(x.dtype).itemsize
    w_it = jnp.dtype(w13.dtype).itemsize
    out_it = x_it
    SUB = 16  # sublane-safe row multiple for f32 / bf16 tiles

    # ---- row-tile selection (generation aware) ----
    if tm is None:
        tm = cfg["max_tm"]
    if cfg["n_cores"] > 1:
        # Make sure the parallel M axis has >= n_cores tiles (megacore sharding).
        tm = min(tm, find_multiple(pl.cdiv(M, cfg["n_cores"]), SUB))
    tm = min(tm, find_multiple(M, SUB))
    tm = find_multiple(tm, SUB)

    single_pass = th == H
    use_scratch = (not single_pass) and (jnp.dtype(x.dtype) != jnp.dtype(jnp.float32))

    def footprint(tm_):
        b = 2 * tm_ * D * x_it + 2 * tm_ * D * out_it        # x + out tiles (double-buffered)
        b += 2 * (D * 2 * th + th * D) * w_it                 # weight tiles (double-buffered)
        b += tm_ * 2 * th * 4 + tm_ * th * 4                  # f32 h13 + gate temporaries
        if use_scratch:
            b += tm_ * D * 4
        return b

    budget = int(cfg["vmem_limit"] * 0.9)
    while tm > SUB and footprint(tm) > budget:
        tm = find_multiple(max(tm // 2, SUB), SUB)

    M_pad = find_multiple(M, tm)
    n_mt = M_pad // tm

    # No wrapper-side dtype cast: x enters the kernel in its own dtype.
    x2d = x.reshape(M, D)
    if M_pad != M:
        x2d = jnp.pad(x2d, ((0, M_pad - M), (0, 0)))

    gate_dtype = (
        jnp.bfloat16
        if (cfg["bf16_gate"] and jnp.dtype(w13.dtype) == jnp.dtype(jnp.bfloat16))
        else jnp.float32
    )

    w_bytes = (w13.size + w2t.size) * w_it
    w_reads = 1 if single_pass else n_mt   # weights re-streamed once per row tile
    cost = pl.CostEstimate(
        flops=6 * M_pad * D * H,           # 3 matmuls of 2*M*D*H
        transcendentals=M_pad * H,         # sigmoid
        bytes_accessed=M_pad * D * x_it + w_reads * w_bytes + M_pad * D * out_it,
    )

    if single_pass:
        grid = (n_mt,)
        kernel = functools.partial(_ffn_single_kernel, th=H, gate_dtype=gate_dtype)
        in_specs = [
            pl.BlockSpec((tm, D), lambda i: (i, 0)),
            pl.BlockSpec((D, 2 * H), lambda i: (0, 0)),
            pl.BlockSpec((H, D), lambda i: (0, 0)),
        ]
        out_specs = pl.BlockSpec((tm, D), lambda i: (i, 0))
        scratch = []
        dim_sem = ("parallel",)
    else:
        grid = (n_mt, H // th)
        in_specs = [
            pl.BlockSpec((tm, D), lambda i, h: (i, 0)),       # x rows (resident over h)
            pl.BlockSpec((D, 2 * th), lambda i, h: (0, h)),   # fused [w1|w3] tile, streamed
            pl.BlockSpec((th, D), lambda i, h: (h, 0)),       # w2 tile, streamed
        ]
        out_specs = pl.BlockSpec((tm, D), lambda i, h: (i, 0))
        if use_scratch:
            kernel = functools.partial(_ffn_stream_kernel_scratch, th=th, gate_dtype=gate_dtype)
            scratch = [pltpu.VMEM((tm, D), jnp.float32)]
        else:
            kernel = functools.partial(_ffn_stream_kernel_accout, th=th, gate_dtype=gate_dtype)
            scratch = []
        dim_sem = ("parallel", "arbitrary")

    out = pl.pallas_call(
        kernel,
        out_shape=jax.ShapeDtypeStruct((M_pad, D), x.dtype),
        grid_spec=pltpu.PrefetchScalarGridSpec(
            num_scalar_prefetch=0,
            grid=grid,
            in_specs=in_specs,
            out_specs=out_specs,
            scratch_shapes=scratch,
        ),
        compiler_params=pltpu.CompilerParams(
            dimension_semantics=dim_sem,
            vmem_limit_bytes=cfg["vmem_limit"],
        ),
        cost_estimate=cost,
    )(x2d, w13, w2t)

    if M_pad != M:
        out = out[:M]
    return out.reshape(B, T, D)


def reference_ffn(x, w1, w3, w2):
    h1 = x @ w1.T
    h3 = x @ w3.T
    silu = h1 * jax.nn.sigmoid(h1)
    return (silu * h3) @ w2.T


if __name__ == "__main__":
    # Small config consistent with ModelArgs semantics:
    #   dim=128, multiple_of=256 => hidden = find_multiple(int(2*4*128/3), 256) = 512
    dim = 128
    multiple_of = 256
    hidden_dim = 4 * dim
    hidden_dim = int(2 * hidden_dim / 3)
    hidden_dim = find_multiple(hidden_dim, multiple_of)  # 512

    batch, seq = 2, 128  # M = 256 rows

    key = jax.random.PRNGKey(0)
    kx, k1, k2, k3 = jax.random.split(key, 4)
    x = jax.random.normal(kx, (batch, seq, dim), dtype=jnp.float32)
    # deterministic parameter init (PyTorch Linear weight layout: (out, in))
    w1 = jax.random.normal(k1, (hidden_dim, dim), dtype=jnp.float32) * 0.02
    w3 = jax.random.normal(k3, (hidden_dim, dim), dtype=jnp.float32) * 0.02
    w2 = jax.random.normal(k2, (dim, hidden_dim), dtype=jnp.float32) * 0.02

    y_ref = reference_ffn(x, w1, w3, w2)

    # --- auto-tiled path (single pass on this tiny config): f32 weights, exact check ---
    th_auto = choose_th(dim, hidden_dim, w_dtype=jnp.float32)
    w13_f32, w2t_f32 = prepare_weights(w1, w3, w2, th=th_auto)
    y = feed_forward(x, w13_f32, w2t_f32, th=th_auto)
    jax.block_until_ready(y)
    assert y.shape == (batch, seq, dim)
    assert jnp.allclose(y, y_ref, atol=1e-4, rtol=1e-4), "mismatch vs reference (f32, single-pass)"

    # --- streamed path (th < H) with bf16 weights: exercises the accumulator kernel ---
    th_stream = 256
    w13_bf16, w2t_bf16 = prepare_weights(w1, w3, w2, th=th_stream, dtype=jnp.bfloat16)
    y_bf16 = feed_forward(x, w13_bf16, w2t_bf16, th=th_stream)
    jax.block_until_ready(y_bf16)
    assert y_bf16.shape == (batch, seq, dim)
    assert float(jnp.max(jnp.abs(y_bf16 - y_ref))) < 5e-2, "bf16 streamed path too far from reference"

    # --- streamed path with f32 weights: exercises accumulate-into-output kernel ---
    w13_s, w2t_s = prepare_weights(w1, w3, w2, th=th_stream)
    y_s = feed_forward(x, w13_s, w2t_s, th=th_stream)
    jax.block_until_ready(y_s)
    assert jnp.allclose(y_s, y_ref, atol=1e-4, rtol=1e-4), "mismatch vs reference (f32, streamed)"

    print("KERNEL_OK")
</pallas_src>

<mosaic_0001>
module attributes {stable_mosaic.version = 11 : i64} {
  func.func @_ffn_single_kernel(%arg0: i32, %arg1: memref<128x128xf32, #tpu.memory_space<vmem>>, %arg2: memref<128x1024xf32, #tpu.memory_space<vmem>>, %arg3: memref<512x128xf32, #tpu.memory_space<vmem>>, %arg4: memref<128x128xf32, #tpu.memory_space<vmem>>) attributes {dimension_semantics = [#tpu.dimension_semantics<parallel>], iteration_bounds = array<i64: 2>, scalar_prefetch = 0 : i64, scratch_operands = 0 : i64, tpu.core_type = #tpu.core_type<tc>, window_params = [{transform_indices = @transform_0, window_bounds = array<i64: 128, 128>}, {pipeline_mode = #tpu.pipeline_mode<synchronous>, transform_indices = @transform_1, window_bounds = array<i64: 128, 1024>}, {pipeline_mode = #tpu.pipeline_mode<synchronous>, transform_indices = @transform_2, window_bounds = array<i64: 512, 128>}, {transform_indices = @transform_3, window_bounds = array<i64: 128, 128>}]} {
    %c0 = arith.constant 0 : index
    %c0_0 = arith.constant 0 : index
    %0 = vector.load %arg1[%c0, %c0_0] : memref<128x128xf32, #tpu.memory_space<vmem>>, vector<128x128xf32>
    %c0_1 = arith.constant 0 : index
    %c0_2 = arith.constant 0 : index
    %1 = vector.load %arg2[%c0_1, %c0_2] : memref<128x1024xf32, #tpu.memory_space<vmem>>, vector<128x1024xf32>
    %cst = arith.constant dense<0.000000e+00> : vector<128x1024xf32>
    %2 = tpu.matmul %0, %1, %cst {dimension_numbers = #tpu.dot_dimension_numbers<[1], [0], [0], [1], [0, 0, 1, 1], [], []>} : vector<128x128xf32>, vector<128x1024xf32>, vector<128x1024xf32> -> vector<128x1024xf32>
    %3 = vector.extract_strided_slice %2 {offsets = [0, 0], sizes = [128, 512], strides = [1, 1]} : vector<128x1024xf32> to vector<128x512xf32>
    %4 = vector.extract_strided_slice %2 {offsets = [0, 512], sizes = [128, 512], strides = [1, 1]} : vector<128x1024xf32> to vector<128x512xf32>
    %5 = arith.negf %3 : vector<128x512xf32>
    %6 = math.exp %5 : vector<128x512xf32>
    %cst_3 = arith.constant 1.000000e+00 : f32
    %7 = vector.broadcast %cst_3 : f32 to vector<128x512xf32>
    %8 = arith.addf %7, %6 : vector<128x512xf32>
    %9 = arith.divf %7, %8 : vector<128x512xf32>
    %10 = arith.mulf %3, %9 : vector<128x512xf32>
    %11 = arith.mulf %10, %4 : vector<128x512xf32>
    %c0_4 = arith.constant 0 : index
    %c0_5 = arith.constant 0 : index
    %12 = vector.load %arg3[%c0_4, %c0_5] : memref<512x128xf32, #tpu.memory_space<vmem>>, vector<512x128xf32>
    %cst_6 = arith.constant dense<0.000000e+00> : vector<128x128xf32>
    %13 = tpu.matmul %11, %12, %cst_6 {dimension_numbers = #tpu.dot_dimension_numbers<[1], [0], [0], [1], [0, 0, 1, 1], [], []>} : vector<128x512xf32>, vector<512x128xf32>, vector<128x128xf32> -> vector<128x128xf32>
    %c0_7 = arith.constant 0 : index
    %c0_8 = arith.constant 0 : index
    %14 = vector.load %arg4[%c0_7, %c0_8] : memref<128x128xf32, #tpu.memory_space<vmem>>, vector<128x128xf32>
    tpu.vector_store %arg4[%c0_7, %c0_8], %13 {strides = array<i32>} : memref<128x128xf32, #tpu.memory_space<vmem>>, vector<128x128xf32>,
    return
  }
  func.func @transform_0(%arg0: i32) -> (i32, i32) {
    %c0_i32 = arith.constant 0 : i32
    %c0_i32_0 = arith.constant 0 : i32
    return %arg0, %c0_i32 : i32, i32
  }
  func.func @transform_1(%arg0: i32) -> (i32, i32) {
    %c0_i32 = arith.constant 0 : i32
    %c0_i32_0 = arith.constant 0 : i32
    %c0_i32_1 = arith.constant 0 : i32
    return %c0_i32, %c0_i32_0 : i32, i32
  }
  func.func @transform_2(%arg0: i32) -> (i32, i32) {
    %c0_i32 = arith.constant 0 : i32
    %c0_i32_0 = arith.constant 0 : i32
    %c0_i32_1 = arith.constant 0 : i32
    return %c0_i32, %c0_i32_0 : i32, i32
  }
  func.func @transform_3(%arg0: i32) -> (i32, i32) {
    %c0_i32 = arith.constant 0 : i32
    %c0_i32_0 = arith.constant 0 : i32
    return %arg0, %c0_i32 : i32, i32
  }
}

</mosaic_0001>

<llo_original>
// kernel: feed_forward.1
$region0: #{feed_forward.1}
  #allocation0 [shape = 'u32[]', space=smem, size = 0x4, offset = 0x4, fixed_abs, tag = 'smem constant byte address 0x4 - core index']
  #allocation1 [shape = 'u32[72,128]{1,0:T(1,128)}', space=vmem, size = 0x9000, scoped, tag = 'internal scratch']
  %s0 = inlined_call_operand.hbm [shape: f32[256,128], index: 0, kind: input, shape index: {}]
  %s1 = inlined_call_operand.hbm [shape: f32[128,1024], index: 1, kind: input, shape index: {}]
  %s2 = inlined_call_operand.hbm [shape: f32[512,128], index: 2, kind: input, shape index: {}]
  %s3 = inlined_call_operand.hbm [shape: f32[256,128], index: 3, kind: output, shape index: {}]
  %s4 = sld [smem:[#allocation0]]
  $region57: #{feed_forward.1} parent=0
    _
  %s6 = ssub.s32 1, %s4
  %s7 = scalar_select 0, %s6, %s4
  $region1: #{feed_forward.1} parent=0
    #allocation2 [shape = 'u8[131072]{0}', space=vmem, size = 0x20000, scoped, tag = 'input window, operand 0']
    #allocation3 [shape = 's32[2]{0}', space=sflag, size = 0x8, scoped, tag = 'scoped memory for feed_forward.1']
    #allocation4 [shape = 's32[2]{0}', space=sflag, size = 0x8, scoped, tag = 'scoped memory for feed_forward.1']
    #allocation5 [shape = 'u8[524288]{0}', space=vmem, size = 0x80000, scoped, tag = 'input window, operand 1, single buffered']
    #allocation6 [shape = 's32[1]{0}', space=sflag, size = 0x4, scoped, tag = 'scoped memory for feed_forward.1']
    #allocation7 [shape = 'u8[262144]{0}', space=vmem, size = 0x40000, scoped, tag = 'input window, operand 2, single buffered']
    #allocation8 [shape = 'u8[131072]{0}', space=vmem, size = 0x20000, scoped, tag = 'output window, operand 0']
    %8 = vsyncpa [#allocation3], 0
    %s9 = scalar_lea.sflag [#allocation3], 1
    %10 = vsyncpa %s9, 0
    %11 = vsyncpa [#allocation6], 0
    %12 = vsyncpa [#allocation4], 0
    %s13 = scalar_lea.sflag [#allocation4], 1
    %14 = vsyncpa %s13, 0
    loop: start=0, step=1, limit=4
    $region2: #{feed_forward.1} parent=1 // loop_pre_header
      _
    $region3: #{feed_forward.1} parent=1 // loop_header
      %s16 = sphi 0, %s20
      %p17 = scmp.ge.s32.totalorder %s16, 4
      %s26 = sphi 0, %s28
      %s29 = sphi 0, %s26
      %s30 = sphi 0, %s29
      %s46 = sphi 0, %s30
      %s50 = sphi 0, %s50
      %s52 = sphi 0, %s50
      %s53 = sphi 0, %s52
      %s67 = sphi 0, %s53
      %s71 = sphi 0, %s71
      %s73 = sphi 0, %s71
      %s74 = sphi 0, %s73
      %s88 = sphi 0, %s74
      %s94 = sphi 0, %s96
      %s97 = sphi 0, %s94
      %s98 = sphi 0, %s97
      %s114 = sphi 0, %s98
    $region4: #{feed_forward.1} parent=1 // loop_header_branch
      %19 = sbr.rel (%p17) target = $region8
    $region5: #{feed_forward.1} parent=1 // loop_body
      %s21 = ssub.s32 %s16, 1
      %s22 = ssub.s32 %s16, 2
      %s23 = sadd.s32 %s16, 1
      %s24 = ssub.s32 %s16, %s23
      %p25 = scmp.eq.s32.totalorder %s24, 0
      %s27 = sadd.s32 %s26, 1
      %s28 = scalar_select %p25, %s26, %s27
      %p31 = pneg %p25
      %p32 = scmp.eq.s32.totalorder %s16, 1
      %p33 = por %p31, %p32
      %p34 = scmp.ne.s32.totalorder %s26, %s29
      %p35 = scmp.eq.s32.totalorder %s16, 0
      %p36 = por %p34, %p35
      %p37 = scmp.ne.s32.totalorder %s26, %s29
      %p38 = scmp.eq.s32.totalorder %s21, 1
      %p39 = por %p37, %p38
      %p40 = scmp.ne.s32.totalorder %s29, %s30
      %p41 = scmp.eq.s32.totalorder %s21, 0
      %p42 = por %p40, %p41
      %p43 = scmp.ne.s32.totalorder %s29, %s30
      %p44 = scmp.eq.s32.totalorder %s22, 1
      %p45 = por %p43, %p44
      %p47 = scmp.ne.s32.totalorder %s30, %s46
      %p48 = scmp.eq.s32.totalorder %s22, 0
      %p49 = por %p47, %p48
      %s51 = sadd.s32 %s50, 1
      %p54 = scmp.eq.s32.totalorder %s16, 1
      %p55 = scmp.ne.s32.totalorder %s50, %s52
      %p56 = scmp.eq.s32.totalorder %s16, 0
      %p57 = por %p55, %p56
      %p58 = scmp.ne.s32.totalorder %s50, %s52
      %p59 = scmp.eq.s32.totalorder %s21, 1
      %p60 = por %p58, %p59
      %p61 = scmp.ne.s32.totalorder %s52, %s53
      %p62 = scmp.eq.s32.totalorder %s21, 0
      %p63 = por %p61, %p62
      %p64 = scmp.ne.s32.totalorder %s52, %s53
      %p65 = scmp.eq.s32.totalorder %s22, 1
      %p66 = por %p64, %p65
      %p68 = scmp.ne.s32.totalorder %s53, %s67
      %p69 = scmp.eq.s32.totalorder %s22, 0
      %p70 = por %p68, %p69
      %s72 = sadd.s32 %s71, 1
      %p75 = scmp.eq.s32.totalorder %s16, 1
      %p76 = scmp.ne.s32.totalorder %s71, %s73
      %p77 = scmp.eq.s32.totalorder %s16, 0
      %p78 = por %p76, %p77
      %p79 = scmp.ne.s32.totalorder %s71, %s73
      %p80 = scmp.eq.s32.totalorder %s21, 1
      %p81 = por %p79, %p80
      %p82 = scmp.ne.s32.totalorder %s73, %s74
      %p83 = scmp.eq.s32.totalorder %s21, 0
      %p84 = por %p82, %p83
      %p85 = scmp.ne.s32.totalorder %s73, %s74
      %p86 = scmp.eq.s32.totalorder %s22, 1
      %p87 = por %p85, %p86
      %p89 = scmp.ne.s32.totalorder %s74, %s88
      %p90 = scmp.eq.s32.totalorder %s22, 0
      %p91 = por %p89, %p90
      %s92 = ssub.s32 %s16, %s23
      %p93 = scmp.eq.s32.totalorder %s92, 0
      %s95 = sadd.s32 %s94, 1
      %s96 = scalar_select %p93, %s94, %s95
      %p99 = pneg %p93
      %p100 = scmp.eq.s32.totalorder %s16, 1
      %p101 = por %p99, %p100
      %p102 = scmp.ne.s32.totalorder %s94, %s97
      %p103 = scmp.eq.s32.totalorder %s16, 0
      %p104 = por %p102, %p103
      %p105 = scmp.ne.s32.totalorder %s94, %s97
      %p106 = scmp.eq.s32.totalorder %s21, 1
      %p107 = por %p105, %p106
      %p108 = scmp.ne.s32.totalorder %s97, %s98
      %p109 = scmp.eq.s32.totalorder %s21, 0
      %p110 = por %p108, %p109
      %p111 = scmp.ne.s32.totalorder %s97, %s98
      %p112 = scmp.eq.s32.totalorder %s22, 1
      %p113 = por %p111, %p112
      %p115 = scmp.ne.s32.totalorder %s98, %s114
      %p116 = scmp.eq.s32.totalorder %s22, 0
      %p117 = por %p115, %p116
      %p118 = scmp.le.s32.totalorder 1, %s16
      %p119 = scmp.lt.s32.totalorder %s16, 3
      %p120 = pnand %p118, %p119
      %p121 = pneg %p120
      // Predicated region
      $region9: #{feed_forward.1} parent=5 // pred_check
        _
      $region10: #{feed_forward.1} parent=5 // pred_check_branch
        %123 = sbr.rel (%p120) target = $region12
      $region11: #{feed_forward.1} parent=5 // pred_region
        %s124 = ssub.s32 %s16, 1
        // Predicated region
        $region13: #{feed_forward.1} parent=11 // pred_check
          %p125 = pneg %p63
        $region14: #{feed_forward.1} parent=11 // pred_check_branch
          %127 = sbr.rel (%p125) target = $region16
        $region15: #{feed_forward.1} parent=11 // pred_region
          %129 = vsyncadd [#allocation6], 0
          %s130 = sshll.u32 %s1, 4
          %s131 = int_to_ptr.hbm [resolvable:$true] %s130
          %s132 = sshll.u32 [#allocation5], 4
          %s133 = int_to_ptr.vmem [resolvable:$true] %s132
          %138 = dma.hbm_to_vmem [thread:$0]  %s131, 16384, %s133, [#allocation6], 1024, 1024, 64
        $region16: #{feed_forward.1} parent=11 // pred_fallthru
          _
        // Predicated region
        $region17: #{feed_forward.1} parent=11 // pred_check
          %p139 = pneg %p84
        $region18: #{feed_forward.1} parent=11 // pred_check_branch
          %141 = sbr.rel (%p139) target = $region20
        $region19: #{feed_forward.1} parent=11 // pred_region
          %143 = vsyncadd [#allocation6], 0
          %s144 = sshll.u32 %s2, 4
          %s145 = int_to_ptr.hbm [resolvable:$true] %s144
          %s146 = sshll.u32 [#allocation7], 4
          %s147 = int_to_ptr.vmem [resolvable:$true] %s146
          %152 = dma.hbm_to_vmem [thread:$0]  %s145, 8192, %s147, [#allocation6], 128, 128, 8
        $region20: #{feed_forward.1} parent=11 // pred_fallthru
          _
      $region12: #{feed_forward.1} parent=5 // pred_fallthru
        _
      %p153 = scmp.lt.s32.totalorder %s16, 2
      // Predicated region
      $region21: #{feed_forward.1} parent=5 // pred_check
        %p154 = pneg %p153
      $region22: #{feed_forward.1} parent=5 // pred_check_branch
        %156 = sbr.rel (%p154) target = $region24
      $region23: #{feed_forward.1} parent=5 // pred_region
        // Predicated region
        $region25: #{feed_forward.1} parent=23 // pred_check
          %p157 = pneg %p36
        $region26: #{feed_forward.1} parent=23 // pred_check_branch
          %159 = sbr.rel (%p157) target = $region28
        $region27: #{feed_forward.1} parent=23 // pred_region
          %s160 = sand.u32 %s26, 1
          %s161 = scalar_lea.sflag [#allocation3], %s160
          %s162 = sand.u32 %s26, 1
          %s163 = smul.addr %s162, 128
          %s164 = scalar_lea.vmem [#allocation2], %s163
          %s165 = smul.u32 16, %s16
          %167 = vsyncadd %s161, 0
          %s168 = smul.addr %s165, 8
          %s169 = scalar_lea.hbm %s0, %s168
          %s170 = sshll.u32 %s169, 4
          %s171 = int_to_ptr.hbm [resolvable:$true] %s170
          %s172 = sshll.u32 %s164, 4
          %s173 = int_to_ptr.vmem [resolvable:$true] %s172
          %178 = dma.hbm_to_vmem [thread:$0]  %s171, 2048, %s173, %s161, 128, 128, 8
        $region28: #{feed_forward.1} parent=23 // pred_fallthru
          _
      $region24: #{feed_forward.1} parent=5 // pred_fallthru
        _
      %p179 = scmp.le.s32.totalorder 1, %s16
      %p180 = scmp.lt.s32.totalorder %s16, 3
      %p181 = pnand %p179, %p180
      %p182 = pneg %p181
      // Predicated region
      $region29: #{feed_forward.1} parent=5 // pred_check
        _
      $region30: #{feed_forward.1} parent=5 // pred_check_branch
        %184 = sbr.rel (%p181) target = $region32
      $region31: #{feed_forward.1} parent=5 // pred_region
        %s185 = ssub.s32 %s16, 1
        %s186 = sand.u32 %s29, 1
        %s187 = scalar_lea.sflag [#allocation3], %s186
        %s188 = sand.u32 %s29, 1
        %s189 = smul.addr %s188, 128
        %s190 = scalar_lea.vmem [#allocation2], %s189
        // Predicated region
        $region33: #{feed_forward.1} parent=31 // pred_check
          %p191 = pneg %p42
        $region34: #{feed_forward.1} parent=31 // pred_check_branch
          %193 = sbr.rel (%p191) target = $region36
        $region35: #{feed_forward.1} parent=31 // pred_region
          %195 = dma.done %s187, 2048
        $region36: #{feed_forward.1} parent=31 // pred_fallthru
          _
        // Predicated region
        $region37: #{feed_forward.1} parent=31 // pred_check
          %p196 = pneg %p63
        $region38: #{feed_forward.1} parent=31 // pred_check_branch
          %198 = sbr.rel (%p196) target = $region40
        $region39: #{feed_forward.1} parent=31 // pred_region
          %200 = dma.done [#allocation6], 16384
        $region40: #{feed_forward.1} parent=31 // pred_fallthru
          _
        // Predicated region
        $region41: #{feed_forward.1} parent=31 // pred_check
          %p201 = pneg %p84
        $region42: #{feed_forward.1} parent=31 // pred_check_branch
          %203 = sbr.rel (%p201) target = $region44
        $region43: #{feed_forward.1} parent=31 // pred_region
          %205 = dma.done [#allocation6], 8192
        $region44: #{feed_forward.1} parent=31 // pred_fallthru
          _
        %s206 = sand.u32 %s29, 1
        %s207 = scalar_lea.sflag [#allocation3], %s206
        %s208 = sand.u32 %s29, 1
        %s209 = smul.addr %s208, 128
        %s210 = scalar_lea.vmem [#allocation2], %s209
        %p211 = pneg %p42
        %p212 = pneg %p39
        %p213 = pneg %p63
        %p214 = pneg %p60
        %p215 = pneg %p84
        %p216 = pneg %p81
        %p217 = pneg %p110
        %p218 = pneg %p107
        %s219 = sand.u32 %s97, 1
        %s220 = scalar_lea.sflag [#allocation4], %s219
        %s221 = sand.u32 %s97, 1
        %s222 = smul.addr %s221, 128
        %s223 = scalar_lea.vmem [#allocation8], %s222
        %s224 = smul.u32 16, %s21
        %s225 = smul.u32 16, %s21
        %v226 = vld [vmem:[%s190] sm:$0xff]
        %v227 = vld [vmem:[%s190 + $0x8] sm:$0xff]
        %v228 = vld [vmem:[%s190 + $0x10] sm:$0xff]
        %v229 = vld [vmem:[%s190 + $0x18] sm:$0xff]
        %v230 = vld [vmem:[%s190 + $0x20] sm:$0xff]
        %v231 = vld [vmem:[%s190 + $0x28] sm:$0xff]
        %v232 = vld [vmem:[%s190 + $0x30] sm:$0xff]
        %v233 = vld [vmem:[%s190 + $0x38] sm:$0xff]
        %v234 = vld [vmem:[%s190 + $0x40] sm:$0xff]
        %v235 = vld [vmem:[%s190 + $0x48] sm:$0xff]
        %v236 = vld [vmem:[%s190 + $0x50] sm:$0xff]
        %v237 = vld [vmem:[%s190 + $0x58] sm:$0xff]
        %v238 = vld [vmem:[%s190 + $0x60] sm:$0xff]
        %v239 = vld [vmem:[%s190 + $0x68] sm:$0xff]
        %v240 = vld [vmem:[%s190 + $0x70] sm:$0xff]
        %v241 = vld [vmem:[%s190 + $0x78] sm:$0xff]
        %v242 = vld [vmem:[#allocation5] sm:$0xff]
        %v243 = vld [vmem:[#allocation5 + $0x8] sm:$0xff]
        %v244 = vld [vmem:[#allocation5 + $0x10] sm:$0xff]
        %v245 = vld [vmem:[#allocation5 + $0x18] sm:$0xff]
        %v246 = vld [vmem:[#allocation5 + $0x20] sm:$0xff]
        %v247 = vld [vmem:[#allocation5 + $0x28] sm:$0xff]
        %v248 = vld [vmem:[#allocation5 + $0x30] sm:$0xff]
        %v249 = vld [vmem:[#allocation5 + $0x38] sm:$0xff]
        %v250 = vld [vmem:[#allocation5 + $0x40] sm:$0xff]
        %v251 = vld [vmem:[#allocation5 + $0x48] sm:$0xff]
        %v252 = vld [vmem:[#allocation5 + $0x50] sm:$0xff]
        %v253 = vld [vmem:[#allocation5 + $0x58] sm:$0xff]
        %v254 = vld [vmem:[#allocation5 + $0x60] sm:$0xff]
        %v255 = vld [vmem:[#allocation5 + $0x68] sm:$0xff]
        %v256 = vld [vmem:[#allocation5 + $0x70] sm:$0xff]
        %v257 = vld [vmem:[#allocation5 + $0x78] sm:$0xff]
        %v258 = vld [vmem:[#allocation5 + $0x80] sm:$0xff]
        %v259 = vld [vmem:[#allocation5 + $0x88] sm:$0xff]
        %v260 = vld [vmem:[#allocation5 + $0x90] sm:$0xff]
        %v261 = vld [vmem:[#allocation5 + $0x98] sm:$0xff]
        %v262 = vld [vmem:[#allocation5 + $0xa0] sm:$0xff]
        %v263 = vld [vmem:[#allocation5 + $0xa8] sm:$0xff]
        %v264 = vld [vmem:[#allocation5 + $0xb0] sm:$0xff]
        %v265 = vld [vmem:[#allocation5 + $0xb8] sm:$0xff]
        %v266 = vld [vmem:[#allocation5 + $0xc0] sm:$0xff]
        %v267 = vld [vmem:[#allocation5 + $0xc8] sm:$0xff]
        %v268 = vld [vmem:[#allocation5 + $0xd0] sm:$0xff]
        %v269 = vld [vmem:[#allocation5 + $0xd8] sm:$0xff]
        %v270 = vld [vmem:[#allocation5 + $0xe0] sm:$0xff]
        %v271 = vld [vmem:[#allocation5 + $0xe8] sm:$0xff]
        %v272 = vld [vmem:[#allocation5 + $0xf0] sm:$0xff]
        %v273 = vld [vmem:[#allocation5 + $0xf8] sm:$0xff]
        %v274 = vld [vmem:[#allocation5 + $0x100] sm:$0xff]
        %v275 = vld [vmem:[#allocation5 + $0x108] sm:$0xff]
        %v276 = vld [vmem:[#allocation5 + $0x110] sm:$0xff]
        %v277 = vld [vmem:[#allocation5 + $0x118] sm:$0xff]
        %v278 = vld [vmem:[#allocation5 + $0x120] sm:$0xff]
        %v279 = vld [vmem:[#allocation5 + $0x128] sm:$0xff]
        %v280 = vld [vmem:[#allocation5 + $0x130] sm:$0xff]
        %v281 = vld [vmem:[#allocation5 + $0x138] sm:$0xff]
        %v282 = vld [vmem:[#allocation5 + $0x140] sm:$0xff]
        %v283 = vld [vmem:[#allocation5 + $0x148] sm:$0xff]
        %v284 = vld [vmem:[#allocation5 + $0x150] sm:$0xff]
        %v285 = vld [vmem:[#allocation5 + $0x158] sm:$0xff]
        %v286 = vld [vmem:[#allocation5 + $0x160] sm:$0xff]
        %v287 = vld [vmem:[#allocation5 + $0x168] sm:$0xff]
        %v288 = vld [vmem:[#allocation5 + $0x170] sm:$0xff]
        %v289 = vld [vmem:[#allocation5 + $0x178] sm:$0xff]
        %v290 = vld [vmem:[#allocation5 + $0x180] sm:$0xff]
        %v291 = vld [vmem:[#allocation5 + $0x188] sm:$0xff]
        %v292 = vld [vmem:[#allocation5 + $0x190] sm:$0xff]
        %v293 = vld [vmem:[#allocation5 + $0x198] sm:$0xff]
        %v294 = vld [vmem:[#allocation5 + $0x1a0] sm:$0xff]
        %v295 = vld [vmem:[#allocation5 + $0x1a8] sm:$0xff]
        %v296 = vld [vmem:[#allocation5 + $0x1b0] sm:$0xff]
        %v297 = vld [vmem:[#allocation5 + $0x1b8] sm:$0xff]
        %v298 = vld [vmem:[#allocation5 + $0x1c0] sm:$0xff]
        %v299 = vld [vmem:[#allocation5 + $0x1c8] sm:$0xff]
        %v300 = vld [vmem:[#allocation5 + $0x1d0] sm:$0xff]
        %v301 = vld [vmem:[#allocation5 + $0x1d8] sm:$0xff]
        %v302 = vld [vmem:[#allocation5 + $0x1e0] sm:$0xff]
        %v303 = vld [vmem:[#allocation5 + $0x1e8] sm:$0xff]
        %v304 = vld [vmem:[#allocation5 + $0x1f0] sm:$0xff]
        %v305 = vld [vmem:[#allocation5 + $0x1f8] sm:$0xff]
        %v306 = vld [vmem:[#allocation5 + $0x200] sm:$0xff]
        %v307 = vld [vmem:[#allocation5 + $0x208] sm:$0xff]
        %v308 = vld [vmem:[#allocation5 + $0x210] sm:$0xff]
        %v309 = vld [vmem:[#allocation5 + $0x218] sm:$0xff]
        %v310 = vld [vmem:[#allocation5 + $0x220] sm:$0xff]
        %v311 = vld [vmem:[#allocation5 + $0x228] sm:$0xff]
        %v312 = vld [vmem:[#allocation5 + $0x230] sm:$0xff]
        %v313 = vld [vmem:[#allocation5 + $0x238] sm:$0xff]
        %v314 = vld [vmem:[#allocation5 + $0x240] sm:$0xff]
        %v315 = vld [vmem:[#allocation5 + $0x248] sm:$0xff]
        %v316 = vld [vmem:[#allocation5 + $0x250] sm:$0xff]
        %v317 = vld [vmem:[#allocation5 + $0x258] sm:$0xff]
        %v318 = vld [vmem:[#allocation5 + $0x260] sm:$0xff]
        %v319 = vld [vmem:[#allocation5 + $0x268] sm:$0xff]
        %v320 = vld [vmem:[#allocation5 + $0x270] sm:$0xff]
        %v321 = vld [vmem:[#allocation5 + $0x278] sm:$0xff]
        %v322 = vld [vmem:[#allocation5 + $0x280] sm:$0xff]
        %v323 = vld [vmem:[#allocation5 + $0x288] sm:$0xff]
        %v324 = vld [vmem:[#allocation5 + $0x290] sm:$0xff]
        %v325 = vld [vmem:[#allocation5 + $0x298] sm:$0xff]
        %v326 = vld [vmem:[#allocation5 + $0x2a0] sm:$0xff]
        %v327 = vld [vmem:[#allocation5 + $0x2a8] sm:$0xff]
        %v328 = vld [vmem:[#allocation5 + $0x2b0] sm:$0xff]
        %v329 = vld [vmem:[#allocation5 + $0x2b8] sm:$0xff]
        %v330 = vld [vmem:[#allocation5 + $0x2c0] sm:$0xff]
        %v331 = vld [vmem:[#allocation5 + $0x2c8] sm:$0xff]
        %v332 = vld [vmem:[#allocation5 + $0x2d0] sm:$0xff]
        %v333 = vld [vmem:[#allocation5 + $0x2d8] sm:$0xff]
        %v334 = vld [vmem:[#allocation5 + $0x2e0] sm:$0xff]
        %v335 = vld [vmem:[#allocation5 + $0x2e8] sm:$0xff]
        %v336 = vld [vmem:[#allocation5 + $0x2f0] sm:$0xff]
        %v337 = vld [vmem:[#allocation5 + $0x2f8] sm:$0xff]
        %v338 = vld [vmem:[#allocation5 + $0x300] sm:$0xff]
        %v339 = vld [vmem:[#allocation5 + $0x308] sm:$0xff]
        %v340 = vld [vmem:[#allocation5 + $0x310] sm:$0xff]
        %v341 = vld [vmem:[#allocation5 + $0x318] sm:$0xff]
        %v342 = vld [vmem:[#allocation5 + $0x320] sm:$0xff]
        %v343 = vld [vmem:[#allocation5 + $0x328] sm:$0xff]
        %v344 = vld [vmem:[#allocation5 + $0x330] sm:$0xff]
        %v345 = vld [vmem:[#allocation5 + $0x338] sm:$0xff]
        %v346 = vld [vmem:[#allocation5 + $0x340] sm:$0xff]
        %v347 = vld [vmem:[#allocation5 + $0x348] sm:$0xff]
        %v348 = vld [vmem:[#allocation5 + $0x350] sm:$0xff]
        %v349 = vld [vmem:[#allocation5 + $0x358] sm:$0xff]
        %v350 = vld [vmem:[#allocation5 + $0x360] sm:$0xff]
        %v351 = vld [vmem:[#allocation5 + $0x368] sm:$0xff]
        %v352 = vld [vmem:[#allocation5 + $0x370] sm:$0xff]
        %v353 = vld [vmem:[#allocation5 + $0x378] sm:$0xff]
        %v354 = vld [vmem:[#allocation5 + $0x380] sm:$0xff]
        %v355 = vld [vmem:[#allocation5 + $0x388] sm:$0xff]
        %v356 = vld [vmem:[#allocation5 + $0x390] sm:$0xff]
        %v357 = vld [vmem:[#allocation5 + $0x398] sm:$0xff]
        %v358 = vld [vmem:[#allocation5 + $0x3a0] sm:$0xff]
        %v359 = vld [vmem:[#allocation5 + $0x3a8] sm:$0xff]
        %v360 = vld [vmem:[#allocation5 + $0x3b0] sm:$0xff]
        %v361 = vld [vmem:[#allocation5 + $0x3b8] sm:$0xff]
        %v362 = vld [vmem:[#allocation5 + $0x3c0] sm:$0xff]
        %v363 = vld [vmem:[#allocation5 + $0x3c8] sm:$0xff]
        %v364 = vld [vmem:[#allocation5 + $0x3d0] sm:$0xff]
        %v365 = vld [vmem:[#allocation5 + $0x3d8] sm:$0xff]
        %v366 = vld [vmem:[#allocation5 + $0x3e0] sm:$0xff]
        %v367 = vld [vmem:[#allocation5 + $0x3e8] sm:$0xff]
        %v368 = vld [vmem:[#allocation5 + $0x3f0] sm:$0xff]
        %v369 = vld [vmem:[#allocation5 + $0x3f8] sm:$0xff]
        %370 = vmatpush.msra.mxu0 %v362
        %371 = vmatpush.msra.mxu0 %v354
        %372 = vmatpush.msra.mxu0 %v346
        %373 = vmatpush.msra.mxu0 %v338
        %374 = vmatpush.msra.mxu0 %v330
        %375 = vmatpush.msra.mxu0 %v322
        %376 = vmatpush.msra.mxu0 %v314
        %377 = vmatpush.msra.mxu0 %v306
        %378 = vmatpush.msra.mxu0 %v298
        %379 = vmatpush.msra.mxu0 %v290
        %380 = vmatpush.msra.mxu0 %v282
        %381 = vmatpush.msra.mxu0 %v274
        %382 = vmatpush.msra.mxu0 %v266
        %383 = vmatpush.msra.mxu0 %v258
        %384 = vmatpush.msra.mxu0 %v250
        %385 = vmatpush.msra.mxu0 %v242
        %386 = vmatmul.f32.gmra.mxu0 %v226
        %v387 = vpop.f32.mrf.mxu0
        %v388 = vadd.f32 0.0, %v387
        %389 = vmatmul.f32.gmra.mxu0 %v227
        %v390 = vpop.f32.mrf.mxu0
        %v391 = vadd.f32 0.0, %v390
        %392 = vmatmul.f32.gmra.mxu0 %v228
        %v393 = vpop.f32.mrf.mxu0
        %v394 = vadd.f32 0.0, %v393
        %395 = vmatmul.f32.gmra.mxu0 %v229
        %v396 = vpop.f32.mrf.mxu0
        %v397 = vadd.f32 0.0, %v396
        %398 = vmatmul.f32.gmra.mxu0 %v230
        %v399 = vpop.f32.mrf.mxu0
        %v400 = vadd.f32 0.0, %v399
        %401 = vmatmul.f32.gmra.mxu0 %v231
        %v402 = vpop.f32.mrf.mxu0
        %v403 = vadd.f32 0.0, %v402
        %404 = vmatmul.f32.gmra.mxu0 %v232
        %v405 = vpop.f32.mrf.mxu0
        %v406 = vadd.f32 0.0, %v405
        %407 = vmatmul.f32.gmra.mxu0 %v233
        %v408 = vpop.f32.mrf.mxu0
        %v409 = vadd.f32 0.0, %v408
        %410 = vmatmul.f32.gmra.mxu0 %v234
        %v411 = vpop.f32.mrf.mxu0
        %v412 = vadd.f32 0.0, %v411
        %413 = vmatmul.f32.gmra.mxu0 %v235
        %v414 = vpop.f32.mrf.mxu0
        %v415 = vadd.f32 0.0, %v414
        %416 = vmatmul.f32.gmra.mxu0 %v236
        %v417 = vpop.f32.mrf.mxu0
        %v418 = vadd.f32 0.0, %v417
        %419 = vmatmul.f32.gmra.mxu0 %v237
        %v420 = vpop.f32.mrf.mxu0
        %v421 = vadd.f32 0.0, %v420
        %422 = vmatmul.f32.gmra.mxu0 %v238
        %v423 = vpop.f32.mrf.mxu0
        %v424 = vadd.f32 0.0, %v423
        %425 = vmatmul.f32.gmra.mxu0 %v239
        %v426 = vpop.f32.mrf.mxu0
        %v427 = vadd.f32 0.0, %v426
        %428 = vmatmul.f32.gmra.mxu0 %v240
        %v429 = vpop.f32.mrf.mxu0
        %v430 = vadd.f32 0.0, %v429
        %431 = vmatmul.f32.gmra.mxu0 %v241
        %v432 = vpop.f32.mrf.mxu0
        %v433 = vadd.f32 0.0, %v432
        %434 = vdwg.mxu0
        %435 = vmatpush.msra.mxu0 %v363
        %436 = vmatpush.msra.mxu0 %v355
        %437 = vmatpush.msra.mxu0 %v347
        %438 = vmatpush.msra.mxu0 %v339
        %439 = vmatpush.msra.mxu0 %v331
        %440 = vmatpush.msra.mxu0 %v323
        %441 = vmatpush.msra.mxu0 %v315
        %442 = vmatpush.msra.mxu0 %v307
        %443 = vmatpush.msra.mxu0 %v299
        %444 = vmatpush.msra.mxu0 %v291
        %445 = vmatpush.msra.mxu0 %v283
        %446 = vmatpush.msra.mxu0 %v275
        %447 = vmatpush.msra.mxu0 %v267
        %448 = vmatpush.msra.mxu0 %v259
        %449 = vmatpush.msra.mxu0 %v251
        %450 = vmatpush.msra.mxu0 %v243
        %451 = vmatmul.f32.gmra.mxu0 %v226
        %v452 = vpop.f32.mrf.mxu0
        %v453 = vadd.f32 0.0, %v452
        %454 = vmatmul.f32.gmra.mxu0 %v227
        %v455 = vpop.f32.mrf.mxu0
        %v456 = vadd.f32 0.0, %v455
        %457 = vmatmul.f32.gmra.mxu0 %v228
        %v458 = vpop.f32.mrf.mxu0
        %v459 = vadd.f32 0.0, %v458
        %460 = vmatmul.f32.gmra.mxu0 %v229
        %v461 = vpop.f32.mrf.mxu0
        %v462 = vadd.f32 0.0, %v461
        %463 = vmatmul.f32.gmra.mxu0 %v230
        %v464 = vpop.f32.mrf.mxu0
        %v465 = vadd.f32 0.0, %v464
        %466 = vmatmul.f32.gmra.mxu0 %v231
        %v467 = vpop.f32.mrf.mxu0
        %v468 = vadd.f32 0.0, %v467
        %469 = vmatmul.f32.gmra.mxu0 %v232
        %v470 = vpop.f32.mrf.mxu0
        %v471 = vadd.f32 0.0, %v470
        %472 = vmatmul.f32.gmra.mxu0 %v233
        %v473 = vpop.f32.mrf.mxu0
        %v474 = vadd.f32 0.0, %v473
        %475 = vmatmul.f32.gmra.mxu0 %v234
        %v476 = vpop.f32.mrf.mxu0
        %v477 = vadd.f32 0.0, %v476
        %478 = vmatmul.f32.gmra.mxu0 %v235
        %v479 = vpop.f32.mrf.mxu0
        %v480 = vadd.f32 0.0, %v479
        %481 = vmatmul.f32.gmra.mxu0 %v236
        %v482 = vpop.f32.mrf.mxu0
        %v483 = vadd.f32 0.0, %v482
        %484 = vmatmul.f32.gmra.mxu0 %v237
        %v485 = vpop.f32.mrf.mxu0
        %v486 = vadd.f32 0.0, %v485
        %487 = vmatmul.f32.gmra.mxu0 %v238
        %v488 = vpop.f32.mrf.mxu0
        %v489 = vadd.f32 0.0, %v488
        %490 = vmatmul.f32.gmra.mxu0 %v239
        %v491 = vpop.f32.mrf.mxu0
        %v492 = vadd.f32 0.0, %v491
        %493 = vmatmul.f32.gmra.mxu0 %v240
        %v494 = vpop.f32.mrf.mxu0
        %v495 = vadd.f32 0.0, %v494
        %496 = vmatmul.f32.gmra.mxu0 %v241
        %v497 = vpop.f32.mrf.mxu0
        %v498 = vadd.f32 0.0, %v497
        %499 = vdwg.mxu0
        %500 = vmatpush.msra.mxu0 %v364
        %501 = vmatpush.msra.mxu0 %v356
        %502 = vmatpush.msra.mxu0 %v348
        %503 = vmatpush.msra.mxu0 %v340
        %504 = vmatpush.msra.mxu0 %v332
        %505 = vmatpush.msra.mxu0 %v324
        %506 = vmatpush.msra.mxu0 %v316
        %507 = vmatpush.msra.mxu0 %v308
        %508 = vmatpush.msra.mxu0 %v300
        %509 = vmatpush.msra.mxu0 %v292
        %510 = vmatpush.msra.mxu0 %v284
        %511 = vmatpush.msra.mxu0 %v276
        %512 = vmatpush.msra.mxu0 %v268
        %513 = vmatpush.msra.mxu0 %v260
        %514 = vmatpush.msra.mxu0 %v252
        %515 = vmatpush.msra.mxu0 %v244
        %516 = vmatmul.f32.gmra.mxu0 %v226
        %v517 = vpop.f32.mrf.mxu0
        %v518 = vadd.f32 0.0, %v517
        %519 = vmatmul.f32.gmra.mxu0 %v227
        %v520 = vpop.f32.mrf.mxu0
        %v521 = vadd.f32 0.0, %v520
        %522 = vmatmul.f32.gmra.mxu0 %v228
        %v523 = vpop.f32.mrf.mxu0
        %v524 = vadd.f32 0.0, %v523
        %525 = vmatmul.f32.gmra.mxu0 %v229
        %v526 = vpop.f32.mrf.mxu0
        %v527 = vadd.f32 0.0, %v526
        %528 = vmatmul.f32.gmra.mxu0 %v230
        %v529 = vpop.f32.mrf.mxu0
        %v530 = vadd.f32 0.0, %v529
        %531 = vmatmul.f32.gmra.mxu0 %v231
        %v532 = vpop.f32.mrf.mxu0
        %v533 = vadd.f32 0.0, %v532
        %534 = vmatmul.f32.gmra.mxu0 %v232
        %v535 = vpop.f32.mrf.mxu0
        %v536 = vadd.f32 0.0, %v535
        %537 = vmatmul.f32.gmra.mxu0 %v233
        %v538 = vpop.f32.mrf.mxu0
        %v539 = vadd.f32 0.0, %v538
        %540 = vmatmul.f32.gmra.mxu0 %v234
        %v541 = vpop.f32.mrf.mxu0
        %v542 = vadd.f32 0.0, %v541
        %543 = vmatmul.f32.gmra.mxu0 %v235
        %v544 = vpop.f32.mrf.mxu0
        %v545 = vadd.f32 0.0, %v544
        %546 = vmatmul.f32.gmra.mxu0 %v236
        %v547 = vpop.f32.mrf.mxu0
        %v548 = vadd.f32 0.0, %v547
        %549 = vmatmul.f32.gmra.mxu0 %v237
        %v550 = vpop.f32.mrf.mxu0
        %v551 = vadd.f32 0.0, %v550
        %552 = vmatmul.f32.gmra.mxu0 %v238
        %v553 = vpop.f32.mrf.mxu0
        %v554 = vadd.f32 0.0, %v553
        %555 = vmatmul.f32.gmra.mxu0 %v239
        %v556 = vpop.f32.mrf.mxu0
        %v557 = vadd.f32 0.0, %v556
        %558 = vmatmul.f32.gmra.mxu0 %v240
        %v559 = vpop.f32.mrf.mxu0
        %v560 = vadd.f32 0.0, %v559
        %561 = vmatmul.f32.gmra.mxu0 %v241
        %v562 = vpop.f32.mrf.mxu0
        %v563 = vadd.f32 0.0, %v562
        %564 = vdwg.mxu0
        %565 = vmatpush.msra.mxu0 %v365
        %566 = vmatpush.msra.mxu0 %v357
        %567 = vmatpush.msra.mxu0 %v349
        %568 = vmatpush.msra.mxu0 %v341
        %569 = vmatpush.msra.mxu0 %v333
        %570 = vmatpush.msra.mxu0 %v325
        %571 = vmatpush.msra.mxu0 %v317
        %572 = vmatpush.msra.mxu0 %v309
        %573 = vmatpush.msra.mxu0 %v301
        %574 = vmatpush.msra.mxu0 %v293
        %575 = vmatpush.msra.mxu0 %v285
        %576 = vmatpush.msra.mxu0 %v277
        %577 = vmatpush.msra.mxu0 %v269
        %578 = vmatpush.msra.mxu0 %v261
        %579 = vmatpush.msra.mxu0 %v253
        %580 = vmatpush.msra.mxu0 %v245
        %581 = vmatmul.f32.gmra.mxu0 %v226
        %v582 = vpop.f32.mrf.mxu0
        %v583 = vadd.f32 0.0, %v582
        %584 = vmatmul.f32.gmra.mxu0 %v227
        %v585 = vpop.f32.mrf.mxu0
        %v586 = vadd.f32 0.0, %v585
        %587 = vmatmul.f32.gmra.mxu0 %v228
        %v588 = vpop.f32.mrf.mxu0
        %v589 = vadd.f32 0.0, %v588
        %590 = vmatmul.f32.gmra.mxu0 %v229
        %v591 = vpop.f32.mrf.mxu0
        %v592 = vadd.f32 0.0, %v591
        %593 = vmatmul.f32.gmra.mxu0 %v230
        %v594 = vpop.f32.mrf.mxu0
        %v595 = vadd.f32 0.0, %v594
        %596 = vmatmul.f32.gmra.mxu0 %v231
        %v597 = vpop.f32.mrf.mxu0
        %v598 = vadd.f32 0.0, %v597
        %599 = vmatmul.f32.gmra.mxu0 %v232
        %v600 = vpop.f32.mrf.mxu0
        %v601 = vadd.f32 0.0, %v600
        %602 = vmatmul.f32.gmra.mxu0 %v233
        %v603 = vpop.f32.mrf.mxu0
        %v604 = vadd.f32 0.0, %v603
        %605 = vmatmul.f32.gmra.mxu0 %v234
        %v606 = vpop.f32.mrf.mxu0
        %v607 = vadd.f32 0.0, %v606
        %608 = vmatmul.f32.gmra.mxu0 %v235
        %v609 = vpop.f32.mrf.mxu0
        %v610 = vadd.f32 0.0, %v609
        %611 = vmatmul.f32.gmra.mxu0 %v236
        %v612 = vpop.f32.mrf.mxu0
        %v613 = vadd.f32 0.0, %v612
        %614 = vmatmul.f32.gmra.mxu0 %v237
        %v615 = vpop.f32.mrf.mxu0
        %v616 = vadd.f32 0.0, %v615
        %617 = vmatmul.f32.gmra.mxu0 %v238
        %v618 = vpop.f32.mrf.mxu0
        %v619 = vadd.f32 0.0, %v618
        %620 = vmatmul.f32.gmra.mxu0 %v239
        %v621 = vpop.f32.mrf.mxu0
        %v622 = vadd.f32 0.0, %v621
        %623 = vmatmul.f32.gmra.mxu0 %v240
        %v624 = vpop.f32.mrf.mxu0
        %v625 = vadd.f32 0.0, %v624
        %626 = vmatmul.f32.gmra.mxu0 %v241
        %v627 = vpop.f32.mrf.mxu0
        %v628 = vadd.f32 0.0, %v627
        %629 = vdwg.mxu0
        %630 = vmatpush.msra.mxu0 %v366
        %631 = vmatpush.msra.mxu0 %v358
        %632 = vmatpush.msra.mxu0 %v350
        %633 = vmatpush.msra.mxu0 %v342
        %634 = vmatpush.msra.mxu0 %v334
        %635 = vmatpush.msra.mxu0 %v326
        %636 = vmatpush.msra.mxu0 %v318
        %637 = vmatpush.msra.mxu0 %v310
        %638 = vmatpush.msra.mxu0 %v302
        %639 = vmatpush.msra.mxu0 %v294
        %640 = vmatpush.msra.mxu0 %v286
        %641 = vmatpush.msra.mxu0 %v278
        %642 = vmatpush.msra.mxu0 %v270
        %643 = vmatpush.msra.mxu0 %v262
        %644 = vmatpush.msra.mxu0 %v254
        %645 = vmatpush.msra.mxu0 %v246
        %646 = vmatmul.f32.gmra.mxu0 %v226
        %v647 = vpop.f32.mrf.mxu0
        %v648 = vadd.f32 0.0, %v647
        %649 = vmatmul.f32.gmra.mxu0 %v227
        %v650 = vpop.f32.mrf.mxu0
        %v651 = vadd.f32 0.0, %v650
        %652 = vmatmul.f32.gmra.mxu0 %v228
        %v653 = vpop.f32.mrf.mxu0
        %v654 = vadd.f32 0.0, %v653
        %655 = vmatmul.f32.gmra.mxu0 %v229
        %v656 = vpop.f32.mrf.mxu0
        %v657 = vadd.f32 0.0, %v656
        %658 = vmatmul.f32.gmra.mxu0 %v230
        %v659 = vpop.f32.mrf.mxu0
        %v660 = vadd.f32 0.0, %v659
        %661 = vmatmul.f32.gmra.mxu0 %v231
        %v662 = vpop.f32.mrf.mxu0
        %v663 = vadd.f32 0.0, %v662
        %664 = vmatmul.f32.gmra.mxu0 %v232
        %v665 = vpop.f32.mrf.mxu0
        %v666 = vadd.f32 0.0, %v665
        %667 = vmatmul.f32.gmra.mxu0 %v233
        %v668 = vpop.f32.mrf.mxu0
        %v669 = vadd.f32 0.0, %v668
        %670 = vmatmul.f32.gmra.mxu0 %v234
        %v671 = vpop.f32.mrf.mxu0
        %v672 = vadd.f32 0.0, %v671
        %673 = vmatmul.f32.gmra.mxu0 %v235
        %v674 = vpop.f32.mrf.mxu0
        %v675 = vadd.f32 0.0, %v674
        %676 = vmatmul.f32.gmra.mxu0 %v236
        %v677 = vpop.f32.mrf.mxu0
        %v678 = vadd.f32 0.0, %v677
        %679 = vmatmul.f32.gmra.mxu0 %v237
        %v680 = vpop.f32.mrf.mxu0
        %v681 = vadd.f32 0.0, %v680
        %682 = vmatmul.f32.gmra.mxu0 %v238
        %v683 = vpop.f32.mrf.mxu0
        %v684 = vadd.f32 0.0, %v683
        %685 = vmatmul.f32.gmra.mxu0 %v239
        %v686 = vpop.f32.mrf.mxu0
        %v687 = vadd.f32 0.0, %v686
        %688 = vmatmul.f32.gmra.mxu0 %v240
        %v689 = vpop.f32.mrf.mxu0
        %v690 = vadd.f32 0.0, %v689
        %691 = vmatmul.f32.gmra.mxu0 %v241
        %v692 = vpop.f32.mrf.mxu0
        %v693 = vadd.f32 0.0, %v692
        %694 = vdwg.mxu0
        %695 = vmatpush.msra.mxu0 %v367
        %696 = vmatpush.msra.mxu0 %v359
        %697 = vmatpush.msra.mxu0 %v351
        %698 = vmatpush.msra.mxu0 %v343
        %699 = vmatpush.msra.mxu0 %v335
        %700 = vmatpush.msra.mxu0 %v327
        %701 = vmatpush.msra.mxu0 %v319
        %702 = vmatpush.msra.mxu0 %v311
        %703 = vmatpush.msra.mxu0 %v303
        %704 = vmatpush.msra.mxu0 %v295
        %705 = vmatpush.msra.mxu0 %v287
        %706 = vmatpush.msra.mxu0 %v279
        %707 = vmatpush.msra.mxu0 %v271
        %708 = vmatpush.msra.mxu0 %v263
        %709 = vmatpush.msra.mxu0 %v255
        %710 = vmatpush.msra.mxu0 %v247
        %711 = vmatmul.f32.gmra.mxu0 %v226
        %v712 = vpop.f32.mrf.mxu0
        %v713 = vadd.f32 0.0, %v712
        %714 = vmatmul.f32.gmra.mxu0 %v227
        %v715 = vpop.f32.mrf.mxu0
        %v716 = vadd.f32 0.0, %v715
        %717 = vmatmul.f32.gmra.mxu0 %v228
        %v718 = vpop.f32.mrf.mxu0
        %v719 = vadd.f32 0.0, %v718
        %720 = vmatmul.f32.gmra.mxu0 %v229
        %v721 = vpop.f32.mrf.mxu0
        %v722 = vadd.f32 0.0, %v721
        %723 = vmatmul.f32.gmra.mxu0 %v230
        %v724 = vpop.f32.mrf.mxu0
        %v725 = vadd.f32 0.0, %v724
        %726 = vmatmul.f32.gmra.mxu0 %v231
        %v727 = vpop.f32.mrf.mxu0
        %v728 = vadd.f32 0.0, %v727
        %729 = vmatmul.f32.gmra.mxu0 %v232
        %v730 = vpop.f32.mrf.mxu0
        %v731 = vadd.f32 0.0, %v730
        %732 = vmatmul.f32.gmra.mxu0 %v233
        %v733 = vpop.f32.mrf.mxu0
        %v734 = vadd.f32 0.0, %v733
        %735 = vmatmul.f32.gmra.mxu0 %v234
        %v736 = vpop.f32.mrf.mxu0
        %v737 = vadd.f32 0.0, %v736
        %738 = vmatmul.f32.gmra.mxu0 %v235
        %v739 = vpop.f32.mrf.mxu0
        %v740 = vadd.f32 0.0, %v739
        %741 = vmatmul.f32.gmra.mxu0 %v236
        %v742 = vpop.f32.mrf.mxu0
        %v743 = vadd.f32 0.0, %v742
        %744 = vmatmul.f32.gmra.mxu0 %v237
        %v745 = vpop.f32.mrf.mxu0
        %v746 = vadd.f32 0.0, %v745
        %747 = vmatmul.f32.gmra.mxu0 %v238
        %v748 = vpop.f32.mrf.mxu0
        %v749 = vadd.f32 0.0, %v748
        %750 = vmatmul.f32.gmra.mxu0 %v239
        %v751 = vpop.f32.mrf.mxu0
        %v752 = vadd.f32 0.0, %v751
        %753 = vmatmul.f32.gmra.mxu0 %v240
        %v754 = vpop.f32.mrf.mxu0
        %v755 = vadd.f32 0.0, %v754
        %756 = vmatmul.f32.gmra.mxu0 %v241
        %v757 = vpop.f32.mrf.mxu0
        %v758 = vadd.f32 0.0, %v757
        %759 = vdwg.mxu0
        %760 = vmatpush.msra.mxu0 %v368
        %761 = vmatpush.msra.mxu0 %v360
        %762 = vmatpush.msra.mxu0 %v352
        %763 = vmatpush.msra.mxu0 %v344
        %764 = vmatpush.msra.mxu0 %v336
        %765 = vmatpush.msra.mxu0 %v328
        %766 = vmatpush.msra.mxu0 %v320
        %767 = vmatpush.msra.mxu0 %v312
        %768 = vmatpush.msra.mxu0 %v304
        %769 = vmatpush.msra.mxu0 %v296
        %770 = vmatpush.msra.mxu0 %v288
        %771 = vmatpush.msra.mxu0 %v280
        %772 = vmatpush.msra.mxu0 %v272
        %773 = vmatpush.msra.mxu0 %v264
        %774 = vmatpush.msra.mxu0 %v256
        %775 = vmatpush.msra.mxu0 %v248
        %776 = vmatmul.f32.gmra.mxu0 %v226
        %v777 = vpop.f32.mrf.mxu0
        %v778 = vadd.f32 0.0, %v777
        %779 = vmatmul.f32.gmra.mxu0 %v227
        %v780 = vpop.f32.mrf.mxu0
        %v781 = vadd.f32 0.0, %v780
        %782 = vmatmul.f32.gmra.mxu0 %v228
        %v783 = vpop.f32.mrf.mxu0
        %v784 = vadd.f32 0.0, %v783
        %785 = vmatmul.f32.gmra.mxu0 %v229
        %v786 = vpop.f32.mrf.mxu0
        %v787 = vadd.f32 0.0, %v786
        %788 = vmatmul.f32.gmra.mxu0 %v230
        %v789 = vpop.f32.mrf.mxu0
        %v790 = vadd.f32 0.0, %v789
        %791 = vmatmul.f32.gmra.mxu0 %v231
        %v792 = vpop.f32.mrf.mxu0
        %v793 = vadd.f32 0.0, %v792
        %794 = vmatmul.f32.gmra.mxu0 %v232
        %v795 = vpop.f32.mrf.mxu0
        %v796 = vadd.f32 0.0, %v795
        %797 = vmatmul.f32.gmra.mxu0 %v233
        %v798 = vpop.f32.mrf.mxu0
        %v799 = vadd.f32 0.0, %v798
        %800 = vmatmul.f32.gmra.mxu0 %v234
        %v801 = vpop.f32.mrf.mxu0
        %v802 = vadd.f32 0.0, %v801
        %803 = vmatmul.f32.gmra.mxu0 %v235
        %v804 = vpop.f32.mrf.mxu0
        %v805 = vadd.f32 0.0, %v804
        %806 = vmatmul.f32.gmra.mxu0 %v236
        %v807 = vpop.f32.mrf.mxu0
        %v808 = vadd.f32 0.0, %v807
        %809 = vmatmul.f32.gmra.mxu0 %v237
        %v810 = vpop.f32.mrf.mxu0
        %v811 = vadd.f32 0.0, %v810
        %812 = vmatmul.f32.gmra.mxu0 %v238
        %v813 = vpop.f32.mrf.mxu0
        %v814 = vadd.f32 0.0, %v813
        %815 = vmatmul.f32.gmra.mxu0 %v239
        %v816 = vpop.f32.mrf.mxu0
        %v817 = vadd.f32 0.0, %v816
        %818 = vmatmul.f32.gmra.mxu0 %v240
        %v819 = vpop.f32.mrf.mxu0
        %v820 = vadd.f32 0.0, %v819
        %821 = vmatmul.f32.gmra.mxu0 %v241
        %v822 = vpop.f32.mrf.mxu0
        %v823 = vadd.f32 0.0, %v822
        %824 = vdwg.mxu0
        %825 = vmatpush.msra.mxu0 %v369
        %826 = vmatpush.msra.mxu0 %v361
        %827 = vmatpush.msra.mxu0 %v353
        %828 = vmatpush.msra.mxu0 %v345
        %829 = vmatpush.msra.mxu0 %v337
        %830 = vmatpush.msra.mxu0 %v329
        %831 = vmatpush.msra.mxu0 %v321
        %832 = vmatpush.msra.mxu0 %v313
        %833 = vmatpush.msra.mxu0 %v305
        %834 = vmatpush.msra.mxu0 %v297
        %835 = vmatpush.msra.mxu0 %v289
        %836 = vmatpush.msra.mxu0 %v281
        %837 = vmatpush.msra.mxu0 %v273
        %838 = vmatpush.msra.mxu0 %v265
        %839 = vmatpush.msra.mxu0 %v257
        %840 = vmatpush.msra.mxu0 %v249
        %841 = vmatmul.f32.gmra.mxu0 %v226
        %v842 = vpop.f32.mrf.mxu0
        %v843 = vadd.f32 0.0, %v842
        %844 = vmatmul.f32.gmra.mxu0 %v227
        %v845 = vpop.f32.mrf.mxu0
        %v846 = vadd.f32 0.0, %v845
        %847 = vmatmul.f32.gmra.mxu0 %v228
        %v848 = vpop.f32.mrf.mxu0
        %v849 = vadd.f32 0.0, %v848
        %850 = vmatmul.f32.gmra.mxu0 %v229
        %v851 = vpop.f32.mrf.mxu0
        %v852 = vadd.f32 0.0, %v851
        %853 = vmatmul.f32.gmra.mxu0 %v230
        %v854 = vpop.f32.mrf.mxu0
        %v855 = vadd.f32 0.0, %v854
        %856 = vmatmul.f32.gmra.mxu0 %v231
        %v857 = vpop.f32.mrf.mxu0
        %v858 = vadd.f32 0.0, %v857
        %859 = vmatmul.f32.gmra.mxu0 %v232
        %v860 = vpop.f32.mrf.mxu0
        %v861 = vadd.f32 0.0, %v860
        %862 = vmatmul.f32.gmra.mxu0 %v233
        %v863 = vpop.f32.mrf.mxu0
        %v864 = vadd.f32 0.0, %v863
        %865 = vmatmul.f32.gmra.mxu0 %v234
        %v866 = vpop.f32.mrf.mxu0
        %v867 = vadd.f32 0.0, %v866
        %868 = vmatmul.f32.gmra.mxu0 %v235
        %v869 = vpop.f32.mrf.mxu0
        %v870 = vadd.f32 0.0, %v869
        %871 = vmatmul.f32.gmra.mxu0 %v236
        %v872 = vpop.f32.mrf.mxu0
        %v873 = vadd.f32 0.0, %v872
        %874 = vmatmul.f32.gmra.mxu0 %v237
        %v875 = vpop.f32.mrf.mxu0
        %v876 = vadd.f32 0.0, %v875
        %877 = vmatmul.f32.gmra.mxu0 %v238
        %v878 = vpop.f32.mrf.mxu0
        %v879 = vadd.f32 0.0, %v878
        %880 = vmatmul.f32.gmra.mxu0 %v239
        %v881 = vpop.f32.mrf.mxu0
        %v882 = vadd.f32 0.0, %v881
        %883 = vmatmul.f32.gmra.mxu0 %v240
        %v884 = vpop.f32.mrf.mxu0
        %v885 = vadd.f32 0.0, %v884
        %886 = vmatmul.f32.gmra.mxu0 %v241
        %v887 = vpop.f32.mrf.mxu0
        %v888 = vadd.f32 0.0, %v887
        %889 = vdwg.mxu0
        %v890 = vxor.u32 %v388, 2147483648
        %v891 = vxor.u32 %v453, 2147483648
        %v892 = vxor.u32 %v518, 2147483648
        %v893 = vxor.u32 %v583, 2147483648
        %v894 = vxor.u32 %v391, 2147483648
        %v895 = vxor.u32 %v456, 2147483648
        %v896 = vxor.u32 %v521, 2147483648
        %v897 = vxor.u32 %v586, 2147483648
        %v898 = vxor.u32 %v394, 2147483648
        %v899 = vxor.u32 %v459, 2147483648
        %v900 = vxor.u32 %v524, 2147483648
        %v901 = vxor.u32 %v589, 2147483648
        %v902 = vxor.u32 %v397, 2147483648
        %v903 = vxor.u32 %v462, 2147483648
        %v904 = vxor.u32 %v527, 2147483648
        %v905 = vxor.u32 %v592, 2147483648
        %v906 = vxor.u32 %v400, 2147483648
        %v907 = vxor.u32 %v465, 2147483648
        %v908 = vxor.u32 %v530, 2147483648
        %v909 = vxor.u32 %v595, 2147483648
        %v910 = vxor.u32 %v403, 2147483648
        %v911 = vxor.u32 %v468, 2147483648
        %v912 = vxor.u32 %v533, 2147483648
        %v913 = vxor.u32 %v598, 2147483648
        %v914 = vxor.u32 %v406, 2147483648
        %v915 = vxor.u32 %v471, 2147483648
        %v916 = vxor.u32 %v536, 2147483648
        %v917 = vxor.u32 %v601, 2147483648
        %v918 = vxor.u32 %v409, 2147483648
        %v919 = vxor.u32 %v474, 2147483648
        %v920 = vxor.u32 %v539, 2147483648
        %v921 = vxor.u32 %v604, 2147483648
        %v922 = vxor.u32 %v412, 2147483648
        %v923 = vxor.u32 %v477, 2147483648
        %v924 = vxor.u32 %v542, 2147483648
        %v925 = vxor.u32 %v607, 2147483648
        %v926 = vxor.u32 %v415, 2147483648
        %v927 = vxor.u32 %v480, 2147483648
        %v928 = vxor.u32 %v545, 2147483648
        %v929 = vxor.u32 %v610, 2147483648
        %v930 = vxor.u32 %v418, 2147483648
        %v931 = vxor.u32 %v483, 2147483648
        %v932 = vxor.u32 %v548, 2147483648
        %v933 = vxor.u32 %v613, 2147483648
        %v934 = vxor.u32 %v421, 2147483648
        %v935 = vxor.u32 %v486, 2147483648
        %v936 = vxor.u32 %v551, 2147483648
        %v937 = vxor.u32 %v616, 2147483648
        %v938 = vxor.u32 %v424, 2147483648
        %v939 = vxor.u32 %v489, 2147483648
        %v940 = vxor.u32 %v554, 2147483648
        %v941 = vxor.u32 %v619, 2147483648
        %v942 = vxor.u32 %v427, 2147483648
        %v943 = vxor.u32 %v492, 2147483648
        %v944 = vxor.u32 %v557, 2147483648
        %v945 = vxor.u32 %v622, 2147483648
        %v946 = vxor.u32 %v430, 2147483648
        %v947 = vxor.u32 %v495, 2147483648
        %v948 = vxor.u32 %v560, 2147483648
        %v949 = vxor.u32 %v625, 2147483648
        %v950 = vxor.u32 %v433, 2147483648
        %v951 = vxor.u32 %v498, 2147483648
        %v952 = vxor.u32 %v563, 2147483648
        %v953 = vxor.u32 %v628, 2147483648
        %v954 = vmul.f32 %v890, 1.442695
        %v955 = vpow.pop %v954
        %v956 = vmul.f32 %v891, 1.442695
        %v957 = vpow.pop %v956
        %v958 = vmul.f32 %v892, 1.442695
        %v959 = vpow.pop %v958
        %v960 = vmul.f32 %v893, 1.442695
        %v961 = vpow.pop %v960
        %v962 = vmul.f32 %v894, 1.442695
        %v963 = vpow.pop %v962
        %v964 = vmul.f32 %v895, 1.442695
        %v965 = vpow.pop %v964
        %v966 = vmul.f32 %v896, 1.442695
        %v967 = vpow.pop %v966
        %v968 = vmul.f32 %v897, 1.442695
        %v969 = vpow.pop %v968
        %v970 = vmul.f32 %v898, 1.442695
        %v971 = vpow.pop %v970
        %v972 = vmul.f32 %v899, 1.442695
        %v973 = vpow.pop %v972
        %v974 = vmul.f32 %v900, 1.442695
        %v975 = vpow.pop %v974
        %v976 = vmul.f32 %v901, 1.442695
        %v977 = vpow.pop %v976
        %v978 = vmul.f32 %v902, 1.442695
        %v979 = vpow.pop %v978
        %v980 = vmul.f32 %v903, 1.442695
        %v981 = vpow.pop %v980
        %v982 = vmul.f32 %v904, 1.442695
        %v983 = vpow.pop %v982
        %v984 = vmul.f32 %v905, 1.442695
        %v985 = vpow.pop %v984
        %v986 = vmul.f32 %v906, 1.442695
        %v987 = vpow.pop %v986
        %v988 = vmul.f32 %v907, 1.442695
        %v989 = vpow.pop %v988
        %v990 = vmul.f32 %v908, 1.442695
        %v991 = vpow.pop %v990
        %v992 = vmul.f32 %v909, 1.442695
        %v993 = vpow.pop %v992
        %v994 = vmul.f32 %v910, 1.442695
        %v995 = vpow.pop %v994
        %v996 = vmul.f32 %v911, 1.442695
        %v997 = vpow.pop %v996
        %v998 = vmul.f32 %v912, 1.442695
        %v999 = vpow.pop %v998
        %v1000 = vmul.f32 %v913, 1.442695
        %v1001 = vpow.pop %v1000
        %v1002 = vmul.f32 %v914, 1.442695
        %v1003 = vpow.pop %v1002
        %v1004 = vmul.f32 %v915, 1.442695
        %v1005 = vpow.pop %v1004
        %v1006 = vmul.f32 %v916, 1.442695
        %v1007 = vpow.pop %v1006
        %v1008 = vmul.f32 %v917, 1.442695
        %v1009 = vpow.pop %v1008
        %v1010 = vmul.f32 %v918, 1.442695
        %v1011 = vpow.pop %v1010
        %v1012 = vmul.f32 %v919, 1.442695
        %v1013 = vpow.pop %v1012
        %v1014 = vmul.f32 %v920, 1.442695
        %v1015 = vpow.pop %v1014
        %v1016 = vmul.f32 %v921, 1.442695
        %v1017 = vpow.pop %v1016
        %v1018 = vmul.f32 %v922, 1.442695
        %v1019 = vpow.pop %v1018
        %v1020 = vmul.f32 %v923, 1.442695
        %v1021 = vpow.pop %v1020
        %v1022 = vmul.f32 %v924, 1.442695
        %v1023 = vpow.pop %v1022
        %v1024 = vmul.f32 %v925, 1.442695
        %v1025 = vpow.pop %v1024
        %v1026 = vmul.f32 %v926, 1.442695
        %v1027 = vpow.pop %v1026
        %v1028 = vmul.f32 %v927, 1.442695
        %v1029 = vpow.pop %v1028
        %v1030 = vmul.f32 %v928, 1.442695
        %v1031 = vpow.pop %v1030
        %v1032 = vmul.f32 %v929, 1.442695
        %v1033 = vpow.pop %v1032
        %v1034 = vmul.f32 %v930, 1.442695
        %v1035 = vpow.pop %v1034
        %v1036 = vmul.f32 %v931, 1.442695
        %v1037 = vpow.pop %v1036
        %v1038 = vmul.f32 %v932, 1.442695
        %v1039 = vpow.pop %v1038
        %v1040 = vmul.f32 %v933, 1.442695
        %v1041 = vpow.pop %v1040
        %v1042 = vmul.f32 %v934, 1.442695
        %v1043 = vpow.pop %v1042
        %v1044 = vmul.f32 %v935, 1.442695
        %v1045 = vpow.pop %v1044
        %v1046 = vmul.f32 %v936, 1.442695
        %v1047 = vpow.pop %v1046
        %v1048 = vmul.f32 %v937, 1.442695
        %v1049 = vpow.pop %v1048
        %v1050 = vmul.f32 %v938, 1.442695
        %v1051 = vpow.pop %v1050
        %v1052 = vmul.f32 %v939, 1.442695
        %v1053 = vpow.pop %v1052
        %v1054 = vmul.f32 %v940, 1.442695
        %v1055 = vpow.pop %v1054
        %v1056 = vmul.f32 %v941, 1.442695
        %v1057 = vpow.pop %v1056
        %v1058 = vmul.f32 %v942, 1.442695
        %v1059 = vpow.pop %v1058
        %v1060 = vmul.f32 %v943, 1.442695
        %v1061 = vpow.pop %v1060
        %v1062 = vmul.f32 %v944, 1.442695
        %v1063 = vpow.pop %v1062
        %v1064 = vmul.f32 %v945, 1.442695
        %v1065 = vpow.pop %v1064
        %v1066 = vmul.f32 %v946, 1.442695
        %v1067 = vpow.pop %v1066
        %v1068 = vmul.f32 %v947, 1.442695
        %v1069 = vpow.pop %v1068
        %v1070 = vmul.f32 %v948, 1.442695
        %v1071 = vpow.pop %v1070
        %v1072 = vmul.f32 %v949, 1.442695
        %v1073 = vpow.pop %v1072
        %v1074 = vmul.f32 %v950, 1.442695
        %v1075 = vpow.pop %v1074
        %v1076 = vmul.f32 %v951, 1.442695
        %v1077 = vpow.pop %v1076
        %v1078 = vmul.f32 %v952, 1.442695
        %v1079 = vpow.pop %v1078
        %v1080 = vmul.f32 %v953, 1.442695
        %v1081 = vpow.pop %v1080
        %v1082 = vadd.f32 %v955, 1.0
        %v1083 = vadd.f32 %v957, 1.0
        %v1084 = vadd.f32 %v959, 1.0
        %v1085 = vadd.f32 %v961, 1.0
        %v1086 = vadd.f32 %v963, 1.0
        %v1087 = vadd.f32 %v965, 1.0
        %v1088 = vadd.f32 %v967, 1.0
        %v1089 = vadd.f32 %v969, 1.0
        %v1090 = vadd.f32 %v971, 1.0
        %v1091 = vadd.f32 %v973, 1.0
        %v1092 = vadd.f32 %v975, 1.0
        %v1093 = vadd.f32 %v977, 1.0
        %v1094 = vadd.f32 %v979, 1.0
        %v1095 = vadd.f32 %v981, 1.0
        %v1096 = vadd.f32 %v983, 1.0
        %v1097 = vadd.f32 %v985, 1.0
        %v1098 = vadd.f32 %v987, 1.0
        %v1099 = vadd.f32 %v989, 1.0
        %v1100 = vadd.f32 %v991, 1.0
        %v1101 = vadd.f32 %v993, 1.0
        %v1102 = vadd.f32 %v995, 1.0
        %v1103 = vadd.f32 %v997, 1.0
        %v1104 = vadd.f32 %v999, 1.0
        %v1105 = vadd.f32 %v1001, 1.0
        %v1106 = vadd.f32 %v1003, 1.0
        %v1107 = vadd.f32 %v1005, 1.0
        %v1108 = vadd.f32 %v1007, 1.0
        %v1109 = vadd.f32 %v1009, 1.0
        %v1110 = vadd.f32 %v1011, 1.0
        %v1111 = vadd.f32 %v1013, 1.0
        %v1112 = vadd.f32 %v1015, 1.0
        %v1113 = vadd.f32 %v1017, 1.0
        %v1114 = vadd.f32 %v1019, 1.0
        %v1115 = vadd.f32 %v1021, 1.0
        %v1116 = vadd.f32 %v1023, 1.0
        %v1117 = vadd.f32 %v1025, 1.0
        %v1118 = vadd.f32 %v1027, 1.0
        %v1119 = vadd.f32 %v1029, 1.0
        %v1120 = vadd.f32 %v1031, 1.0
        %v1121 = vadd.f32 %v1033, 1.0
        %v1122 = vadd.f32 %v1035, 1.0
        %v1123 = vadd.f32 %v1037, 1.0
        %v1124 = vadd.f32 %v1039, 1.0
        %v1125 = vadd.f32 %v1041, 1.0
        %v1126 = vadd.f32 %v1043, 1.0
        %v1127 = vadd.f32 %v1045, 1.0
        %v1128 = vadd.f32 %v1047, 1.0
        %v1129 = vadd.f32 %v1049, 1.0
        %v1130 = vadd.f32 %v1051, 1.0
        %v1131 = vadd.f32 %v1053, 1.0
        %v1132 = vadd.f32 %v1055, 1.0
        %v1133 = vadd.f32 %v1057, 1.0
        %v1134 = vadd.f32 %v1059, 1.0
        %v1135 = vadd.f32 %v1061, 1.0
        %v1136 = vadd.f32 %v1063, 1.0
        %v1137 = vadd.f32 %v1065, 1.0
        %v1138 = vadd.f32 %v1067, 1.0
        %v1139 = vadd.f32 %v1069, 1.0
        %v1140 = vadd.f32 %v1071, 1.0
        %v1141 = vadd.f32 %v1073, 1.0
        %v1142 = vadd.f32 %v1075, 1.0
        %v1143 = vadd.f32 %v1077, 1.0
        %v1144 = vadd.f32 %v1079, 1.0
        %v1145 = vadd.f32 %v1081, 1.0
        %v1146 = vrcp.pop %v1082
        %v1147 = vmul.f32 %v1082, %v1146
        %v1148 = vsub.f32 1.0, %v1147
        %v1149 = vmul.f32 %v1146, %v1148
        %v1150 = vadd.f32 %v1146, %v1149
        %vm1151 = vweird.f32 %v1082
        %vm1152 = vweird.f32 %v1146
        %vm1153 = vmor %vm1151, %vm1152
        %v1154 = vsel %vm1153, %v1146, %v1150
        %v1155 = vand.u32 2147483647, %v1082
        %vm1156 = vcmp.eq.f32.partialorder %v1155, 8.507059e+37
        %v1157 = vand.u32 %v1082, 2147483648
        %v1158 = vor.u32 1.1754944e-38, %v1157
        %v1159 = vsel %vm1156, %v1158, %v1154
        %v1160 = vmul.f32 1.0, %v1159
        %v1161 = vrcp.pop %v1083
        %v1162 = vmul.f32 %v1083, %v1161
        %v1163 = vsub.f32 1.0, %v1162
        %v1164 = vmul.f32 %v1161, %v1163
        %v1165 = vadd.f32 %v1161, %v1164
        %vm1166 = vweird.f32 %v1083
        %vm1167 = vweird.f32 %v1161
        %vm1168 = vmor %vm1166, %vm1167
        %v1169 = vsel %vm1168, %v1161, %v1165
        %v1170 = vand.u32 2147483647, %v1083
        %vm1171 = vcmp.eq.f32.partialorder %v1170, 8.507059e+37
        %v1172 = vand.u32 %v1083, 2147483648
        %v1173 = vor.u32 1.1754944e-38, %v1172
        %v1174 = vsel %vm1171, %v1173, %v1169
        %v1175 = vmul.f32 1.0, %v1174
        %v1176 = vrcp.pop %v1084
        %v1177 = vmul.f32 %v1084, %v1176
        %v1178 = vsub.f32 1.0, %v1177
        %v1179 = vmul.f32 %v1176, %v1178
        %v1180 = vadd.f32 %v1176, %v1179
        %vm1181 = vweird.f32 %v1084
        %vm1182 = vweird.f32 %v1176
        %vm1183 = vmor %vm1181, %vm1182
        %v1184 = vsel %vm1183, %v1176, %v1180
        %v1185 = vand.u32 2147483647, %v1084
        %vm1186 = vcmp.eq.f32.partialorder %v1185, 8.507059e+37
        %v1187 = vand.u32 %v1084, 2147483648
        %v1188 = vor.u32 1.1754944e-38, %v1187
        %v1189 = vsel %vm1186, %v1188, %v1184
        %v1190 = vmul.f32 1.0, %v1189
        %v1191 = vrcp.pop %v1085
        %v1192 = vmul.f32 %v1085, %v1191
        %v1193 = vsub.f32 1.0, %v1192
        %v1194 = vmul.f32 %v1191, %v1193
        %v1195 = vadd.f32 %v1191, %v1194
        %vm1196 = vweird.f32 %v1085
        %vm1197 = vweird.f32 %v1191
        %vm1198 = vmor %vm1196, %vm1197
        %v1199 = vsel %vm1198, %v1191, %v1195
        %v1200 = vand.u32 2147483647, %v1085
        %vm1201 = vcmp.eq.f32.partialorder %v1200, 8.507059e+37
        %v1202 = vand.u32 %v1085, 2147483648
        %v1203 = vor.u32 1.1754944e-38, %v1202
        %v1204 = vsel %vm1201, %v1203, %v1199
        %v1205 = vmul.f32 1.0, %v1204
        %v1206 = vrcp.pop %v1086
        %v1207 = vmul.f32 %v1086, %v1206
        %v1208 = vsub.f32 1.0, %v1207
        %v1209 = vmul.f32 %v1206, %v1208
        %v1210 = vadd.f32 %v1206, %v1209
        %vm1211 = vweird.f32 %v1086
        %vm1212 = vweird.f32 %v1206
        %vm1213 = vmor %vm1211, %vm1212
        %v1214 = vsel %vm1213, %v1206, %v1210
        %v1215 = vand.u32 2147483647, %v1086
        %vm1216 = vcmp.eq.f32.partialorder %v1215, 8.507059e+37
        %v1217 = vand.u32 %v1086, 2147483648
        %v1218 = vor.u32 1.1754944e-38, %v1217
        %v1219 = vsel %vm1216, %v1218, %v1214
        %v1220 = vmul.f32 1.0, %v1219
        %v1221 = vrcp.pop %v1087
        %v1222 = vmul.f32 %v1087, %v1221
        %v1223 = vsub.f32 1.0, %v1222
        %v1224 = vmul.f32 %v1221, %v1223
        %v1225 = vadd.f32 %v1221, %v1224
        %vm1226 = vweird.f32 %v1087
        %vm1227 = vweird.f32 %v1221
        %vm1228 = vmor %vm1226, %vm1227
        %v1229 = vsel %vm1228, %v1221, %v1225
        %v1230 = vand.u32 2147483647, %v1087
        %vm1231 = vcmp.eq.f32.partialorder %v1230, 8.507059e+37
        %v1232 = vand.u32 %v1087, 2147483648
        %v1233 = vor.u32 1.1754944e-38, %v1232
        %v1234 = vsel %vm1231, %v1233, %v1229
        %v1235 = vmul.f32 1.0, %v1234
        %v1236 = vrcp.pop %v1088
        %v1237 = vmul.f32 %v1088, %v1236
        %v1238 = vsub.f32 1.0, %v1237
        %v1239 = vmul.f32 %v1236, %v1238
        %v1240 = vadd.f32 %v1236, %v1239
        %vm1241 = vweird.f32 %v1088
        %vm1242 = vweird.f32 %v1236
        %vm1243 = vmor %vm1241, %vm1242
        %v1244 = vsel %vm1243, %v1236, %v1240
        %v1245 = vand.u32 2147483647, %v1088
        %vm1246 = vcmp.eq.f32.partialorder %v1245, 8.507059e+37
        %v1247 = vand.u32 %v1088, 2147483648
        %v1248 = vor.u32 1.1754944e-38, %v1247
        %v1249 = vsel %vm1246, %v1248, %v1244
        %v1250 = vmul.f32 1.0, %v1249
        %v1251 = vrcp.pop %v1089
        %v1252 = vmul.f32 %v1089, %v1251
        %v1253 = vsub.f32 1.0, %v1252
        %v1254 = vmul.f32 %v1251, %v1253
        %v1255 = vadd.f32 %v1251, %v1254
        %vm1256 = vweird.f32 %v1089
        %vm1257 = vweird.f32 %v1251
        %vm1258 = vmor %vm1256, %vm1257
        %v1259 = vsel %vm1258, %v1251, %v1255
        %v1260 = vand.u32 2147483647, %v1089
        %vm1261 = vcmp.eq.f32.partialorder %v1260, 8.507059e+37
        %v1262 = vand.u32 %v1089, 2147483648
        %v1263 = vor.u32 1.1754944e-38, %v1262
        %v1264 = vsel %vm1261, %v1263, %v1259
        %v1265 = vmul.f32 1.0, %v1264
        %v1266 = vrcp.pop %v1090
        %v1267 = vmul.f32 %v1090, %v1266
        %v1268 = vsub.f32 1.0, %v1267
        %v1269 = vmul.f32 %v1266, %v1268
        %v1270 = vadd.f32 %v1266, %v1269
        %vm1271 = vweird.f32 %v1090
        %vm1272 = vweird.f32 %v1266
        %vm1273 = vmor %vm1271, %vm1272
        %v1274 = vsel %vm1273, %v1266, %v1270
        %v1275 = vand.u32 2147483647, %v1090
        %vm1276 = vcmp.eq.f32.partialorder %v1275, 8.507059e+37
        %v1277 = vand.u32 %v1090, 2147483648
        %v1278 = vor.u32 1.1754944e-38, %v1277
        %v1279 = vsel %vm1276, %v1278, %v1274
        %v1280 = vmul.f32 1.0, %v1279
        %v1281 = vrcp.pop %v1091
        %v1282 = vmul.f32 %v1091, %v1281
        %v1283 = vsub.f32 1.0, %v1282
        %v1284 = vmul.f32 %v1281, %v1283
        %v1285 = vadd.f32 %v1281, %v1284
        %vm1286 = vweird.f32 %v1091
        %vm1287 = vweird.f32 %v1281
        %vm1288 = vmor %vm1286, %vm1287
        %v1289 = vsel %vm1288, %v1281, %v1285
        %v1290 = vand.u32 2147483647, %v1091
        %vm1291 = vcmp.eq.f32.partialorder %v1290, 8.507059e+37
        %v1292 = vand.u32 %v1091, 2147483648
        %v1293 = vor.u32 1.1754944e-38, %v1292
        %v1294 = vsel %vm1291, %v1293, %v1289
        %v1295 = vmul.f32 1.0, %v1294
        %v1296 = vrcp.pop %v1092
        %v1297 = vmul.f32 %v1092, %v1296
        %v1298 = vsub.f32 1.0, %v1297
        %v1299 = vmul.f32 %v1296, %v1298
        %v1300 = vadd.f32 %v1296, %v1299
        %vm1301 = vweird.f32 %v1092
        %vm1302 = vweird.f32 %v1296
        %vm1303 = vmor %vm1301, %vm1302
        %v1304 = vsel %vm1303, %v1296, %v1300
        %v1305 = vand.u32 2147483647, %v1092
        %vm1306 = vcmp.eq.f32.partialorder %v1305, 8.507059e+37
        %v1307 = vand.u32 %v1092, 2147483648
        %v1308 = vor.u32 1.1754944e-38, %v1307
        %v1309 = vsel %vm1306, %v1308, %v1304
        %v1310 = vmul.f32 1.0, %v1309
        %v1311 = vrcp.pop %v1093
        %v1312 = vmul.f32 %v1093, %v1311
        %v1313 = vsub.f32 1.0, %v1312
        %v1314 = vmul.f32 %v1311, %v1313
        %v1315 = vadd.f32 %v1311, %v1314
        %vm1316 = vweird.f32 %v1093
        %vm1317 = vweird.f32 %v1311
        %vm1318 = vmor %vm1316, %vm1317
        %v1319 = vsel %vm1318, %v1311, %v1315
        %v1320 = vand.u32 2147483647, %v1093
        %vm1321 = vcmp.eq.f32.partialorder %v1320, 8.507059e+37
        %v1322 = vand.u32 %v1093, 2147483648
        %v1323 = vor.u32 1.1754944e-38, %v1322
        %v1324 = vsel %vm1321, %v1323, %v1319
        %v1325 = vmul.f32 1.0, %v1324
        %v1326 = vrcp.pop %v1094
        %v1327 = vmul.f32 %v1094, %v1326
        %v1328 = vsub.f32 1.0, %v1327
        %v1329 = vmul.f32 %v1326, %v1328
        %v1330 = vadd.f32 %v1326, %v1329
        %vm1331 = vweird.f32 %v1094
        %vm1332 = vweird.f32 %v1326
        %vm1333 = vmor %vm1331, %vm1332
        %v1334 = vsel %vm1333, %v1326, %v1330
        %v1335 = vand.u32 2147483647, %v1094
        %vm1336 = vcmp.eq.f32.partialorder %v1335, 8.507059e+37
        %v1337 = vand.u32 %v1094, 2147483648
        %v1338 = vor.u32 1.1754944e-38, %v1337
        %v1339 = vsel %vm1336, %v1338, %v1334
        %v1340 = vmul.f32 1.0, %v1339
        %v1341 = vrcp.pop %v1095
        %v1342 = vmul.f32 %v1095, %v1341
        %v1343 = vsub.f32 1.0, %v1342
        %v1344 = vmul.f32 %v1341, %v1343
        %v1345 = vadd.f32 %v1341, %v1344
        %vm1346 = vweird.f32 %v1095
        %vm1347 = vweird.f32 %v1341
        %vm1348 = vmor %vm1346, %vm1347
        %v1349 = vsel %vm1348, %v1341, %v1345
        %v1350 = vand.u32 2147483647, %v1095
        %vm1351 = vcmp.eq.f32.partialorder %v1350, 8.507059e+37
        %v1352 = vand.u32 %v1095, 2147483648
        %v1353 = vor.u32 1.1754944e-38, %v1352
        %v1354 = vsel %vm1351, %v1353, %v1349
        %v1355 = vmul.f32 1.0, %v1354
        %v1356 = vrcp.pop %v1096
        %v1357 = vmul.f32 %v1096, %v1356
        %v1358 = vsub.f32 1.0, %v1357
        %v1359 = vmul.f32 %v1356, %v1358
        %v1360 = vadd.f32 %v1356, %v1359
        %vm1361 = vweird.f32 %v1096
        %vm1362 = vweird.f32 %v1356
        %vm1363 = vmor %vm1361, %vm1362
        %v1364 = vsel %vm1363, %v1356, %v1360
        %v1365 = vand.u32 2147483647, %v1096
        %vm1366 = vcmp.eq.f32.partialorder %v1365, 8.507059e+37
        %v1367 = vand.u32 %v1096, 2147483648
        %v1368 = vor.u32 1.1754944e-38, %v1367
        %v1369 = vsel %vm1366, %v1368, %v1364
        %v1370 = vmul.f32 1.0, %v1369
        %v1371 = vrcp.pop %v1097
        %v1372 = vmul.f32 %v1097, %v1371
        %v1373 = vsub.f32 1.0, %v1372
        %v1374 = vmul.f32 %v1371, %v1373
        %v1375 = vadd.f32 %v1371, %v1374
        %vm1376 = vweird.f32 %v1097
        %vm1377 = vweird.f32 %v1371
        %vm1378 = vmor %vm1376, %vm1377
        %v1379 = vsel %vm1378, %v1371, %v1375
        %v1380 = vand.u32 2147483647, %v1097
        %vm1381 = vcmp.eq.f32.partialorder %v1380, 8.507059e+37
        %v1382 = vand.u32 %v1097, 2147483648
        %v1383 = vor.u32 1.1754944e-38, %v1382
        %v1384 = vsel %vm1381, %v1383, %v1379
        %v1385 = vmul.f32 1.0, %v1384
        %v1386 = vrcp.pop %v1098
        %v1387 = vmul.f32 %v1098, %v1386
        %v1388 = vsub.f32 1.0, %v1387
        %v1389 = vmul.f32 %v1386, %v1388
        %v1390 = vadd.f32 %v1386, %v1389
        %vm1391 = vweird.f32 %v1098
        %vm1392 = vweird.f32 %v1386
        %vm1393 = vmor %vm1391, %vm1392
        %v1394 = vsel %vm1393, %v1386, %v1390
        %v1395 = vand.u32 2147483647, %v1098
        %vm1396 = vcmp.eq.f32.partialorder %v1395, 8.507059e+37
        %v1397 = vand.u32 %v1098, 2147483648
        %v1398 = vor.u32 1.1754944e-38, %v1397
        %v1399 = vsel %vm1396, %v1398, %v1394
        %v1400 = vmul.f32 1.0, %v1399
        %v1401 = vrcp.pop %v1099
        %v1402 = vmul.f32 %v1099, %v1401
        %v1403 = vsub.f32 1.0, %v1402
        %v1404 = vmul.f32 %v1401, %v1403
        %v1405 = vadd.f32 %v1401, %v1404
        %vm1406 = vweird.f32 %v1099
        %vm1407 = vweird.f32 %v1401
        %vm1408 = vmor %vm1406, %vm1407
        %v1409 = vsel %vm1408, %v1401, %v1405
        %v1410 = vand.u32 2147483647, %v1099
        %vm1411 = vcmp.eq.f32.partialorder %v1410, 8.507059e+37
        %v1412 = vand.u32 %v1099, 2147483648
        %v1413 = vor.u32 1.1754944e-38, %v1412
        %v1414 = vsel %vm1411, %v1413, %v1409
        %v1415 = vmul.f32 1.0, %v1414
        %v1416 = vrcp.pop %v1100
        %v1417 = vmul.f32 %v1100, %v1416
        %v1418 = vsub.f32 1.0, %v1417
        %v1419 = vmul.f32 %v1416, %v1418
        %v1420 = vadd.f32 %v1416, %v1419
        %vm1421 = vweird.f32 %v1100
        %vm1422 = vweird.f32 %v1416
        %vm1423 = vmor %vm1421, %vm1422
        %v1424 = vsel %vm1423, %v1416, %v1420
        %v1425 = vand.u32 2147483647, %v1100
        %vm1426 = vcmp.eq.f32.partialorder %v1425, 8.507059e+37
        %v1427 = vand.u32 %v1100, 2147483648
        %v1428 = vor.u32 1.1754944e-38, %v1427
        %v1429 = vsel %vm1426, %v1428, %v1424
        %v1430 = vmul.f32 1.0, %v1429
        %v1431 = vrcp.pop %v1101
        %v1432 = vmul.f32 %v1101, %v1431
        %v1433 = vsub.f32 1.0, %v1432
        %v1434 = vmul.f32 %v1431, %v1433
        %v1435 = vadd.f32 %v1431, %v1434
        %vm1436 = vweird.f32 %v1101
        %vm1437 = vweird.f32 %v1431
        %vm1438 = vmor %vm1436, %vm1437
        %v1439 = vsel %vm1438, %v1431, %v1435
        %v1440 = vand.u32 2147483647, %v1101
        %vm1441 = vcmp.eq.f32.partialorder %v1440, 8.507059e+37
        %v1442 = vand.u32 %v1101, 2147483648
        %v1443 = vor.u32 1.1754944e-38, %v1442
        %v1444 = vsel %vm1441, %v1443, %v1439
        %v1445 = vmul.f32 1.0, %v1444
        %v1446 = vrcp.pop %v1102
        %v1447 = vmul.f32 %v1102, %v1446
        %v1448 = vsub.f32 1.0, %v1447
        %v1449 = vmul.f32 %v1446, %v1448
        %v1450 = vadd.f32 %v1446, %v1449
        %vm1451 = vweird.f32 %v1102
        %vm1452 = vweird.f32 %v1446
        %vm1453 = vmor %vm1451, %vm1452
        %v1454 = vsel %vm1453, %v1446, %v1450
        %v1455 = vand.u32 2147483647, %v1102
        %vm1456 = vcmp.eq.f32.partialorder %v1455, 8.507059e+37
        %v1457 = vand.u32 %v1102, 2147483648
        %v1458 = vor.u32 1.1754944e-38, %v1457
        %v1459 = vsel %vm1456, %v1458, %v1454
        %v1460 = vmul.f32 1.0, %v1459
        %v1461 = vrcp.pop %v1103
        %v1462 = vmul.f32 %v1103, %v1461
        %v1463 = vsub.f32 1.0, %v1462
        %v1464 = vmul.f32 %v1461, %v1463
        %v1465 = vadd.f32 %v1461, %v1464
        %vm1466 = vweird.f32 %v1103
        %vm1467 = vweird.f32 %v1461
        %vm1468 = vmor %vm1466, %vm1467
        %v1469 = vsel %vm1468, %v1461, %v1465
        %v1470 = vand.u32 2147483647, %v1103
        %vm1471 = vcmp.eq.f32.partialorder %v1470, 8.507059e+37
        %v1472 = vand.u32 %v1103, 2147483648
        %v1473 = vor.u32 1.1754944e-38, %v1472
        %v1474 = vsel %vm1471, %v1473, %v1469
        %v1475 = vmul.f32 1.0, %v1474
        %v1476 = vrcp.pop %v1104
        %v1477 = vmul.f32 %v1104, %v1476
        %v1478 = vsub.f32 1.0, %v1477
        %v1479 = vmul.f32 %v1476, %v1478
        %v1480 = vadd.f32 %v1476, %v1479
        %vm1481 = vweird.f32 %v1104
        %vm1482 = vweird.f32 %v1476
        %vm1483 = vmor %vm1481, %vm1482
        %v1484 = vsel %vm1483, %v1476, %v1480
        %v1485 = vand.u32 2147483647, %v1104
        %vm1486 = vcmp.eq.f32.partialorder %v1485, 8.507059e+37
        %v1487 = vand.u32 %v1104, 2147483648
        %v1488 = vor.u32 1.1754944e-38, %v1487
        %v1489 = vsel %vm1486, %v1488, %v1484
        %v1490 = vmul.f32 1.0, %v1489
        %v1491 = vrcp.pop %v1105
        %v1492 = vmul.f32 %v1105, %v1491
        %v1493 = vsub.f32 1.0, %v1492
        %v1494 = vmul.f32 %v1491, %v1493
        %v1495 = vadd.f32 %v1491, %v1494
        %vm1496 = vweird.f32 %v1105
        %vm1497 = vweird.f32 %v1491
        %vm1498 = vmor %vm1496, %vm1497
        %v1499 = vsel %vm1498, %v1491, %v1495
        %v1500 = vand.u32 2147483647, %v1105
        %vm1501 = vcmp.eq.f32.partialorder %v1500, 8.507059e+37
        %v1502 = vand.u32 %v1105, 2147483648
        %v1503 = vor.u32 1.1754944e-38, %v1502
        %v1504 = vsel %vm1501, %v1503, %v1499
        %v1505 = vmul.f32 1.0, %v1504
        %v1506 = vrcp.pop %v1106
        %v1507 = vmul.f32 %v1106, %v1506
        %v1508 = vsub.f32 1.0, %v1507
        %v1509 = vmul.f32 %v1506, %v1508
        %v1510 = vadd.f32 %v1506, %v1509
        %vm1511 = vweird.f32 %v1106
        %vm1512 = vweird.f32 %v1506
        %vm1513 = vmor %vm1511, %vm1512
        %v1514 = vsel %vm1513, %v1506, %v1510
        %v1515 = vand.u32 2147483647, %v1106
        %vm1516 = vcmp.eq.f32.partialorder %v1515, 8.507059e+37
        %v1517 = vand.u32 %v1106, 2147483648
        %v1518 = vor.u32 1.1754944e-38, %v1517
        %v1519 = vsel %vm1516, %v1518, %v1514
        %v1520 = vmul.f32 1.0, %v1519
        %v1521 = vrcp.pop %v1107
        %v1522 = vmul.f32 %v1107, %v1521
        %v1523 = vsub.f32 1.0, %v1522
        %v1524 = vmul.f32 %v1521, %v1523
        %v1525 = vadd.f32 %v1521, %v1524
        %vm1526 = vweird.f32 %v1107
        %vm1527 = vweird.f32 %v1521
        %vm1528 = vmor %vm1526, %vm1527
        %v1529 = vsel %vm1528, %v1521, %v1525
        %v1530 = vand.u32 2147483647, %v1107
        %vm1531 = vcmp.eq.f32.partialorder %v1530, 8.507059e+37
        %v1532 = vand.u32 %v1107, 2147483648
        %v1533 = vor.u32 1.1754944e-38, %v1532
        %v1534 = vsel %vm1531, %v1533, %v1529
        %v1535 = vmul.f32 1.0, %v1534
        %v1536 = vrcp.pop %v1108
        %v1537 = vmul.f32 %v1108, %v1536
        %v1538 = vsub.f32 1.0, %v1537
        %v1539 = vmul.f32 %v1536, %v1538
        %v1540 = vadd.f32 %v1536, %v1539
        %vm1541 = vweird.f32 %v1108
        %vm1542 = vweird.f32 %v1536
        %vm1543 = vmor %vm1541, %vm1542
        %v1544 = vsel %vm1543, %v1536, %v1540
        %v1545 = vand.u32 2147483647, %v1108
        %vm1546 = vcmp.eq.f32.partialorder %v1545, 8.507059e+37
        %v1547 = vand.u32 %v1108, 2147483648
        %v1548 = vor.u32 1.1754944e-38, %v1547
        %v1549 = vsel %vm1546, %v1548, %v1544
        %v1550 = vmul.f32 1.0, %v1549
        %v1551 = vrcp.pop %v1109
        %v1552 = vmul.f32 %v1109, %v1551
        %v1553 = vsub.f32 1.0, %v1552
        %v1554 = vmul.f32 %v1551, %v1553
        %v1555 = vadd.f32 %v1551, %v1554
        %vm1556 = vweird.f32 %v1109
        %vm1557 = vweird.f32 %v1551
        %vm1558 = vmor %vm1556, %vm1557
        %v1559 = vsel %vm1558, %v1551, %v1555
        %v1560 = vand.u32 2147483647, %v1109
        %vm1561 = vcmp.eq.f32.partialorder %v1560, 8.507059e+37
        %v1562 = vand.u32 %v1109, 2147483648
        %v1563 = vor.u32 1.1754944e-38, %v1562
        %v1564 = vsel %vm1561, %v1563, %v1559
        %v1565 = vmul.f32 1.0, %v1564
        %v1566 = vrcp.pop %v1110
        %v1567 = vmul.f32 %v1110, %v1566
        %v1568 = vsub.f32 1.0, %v1567
        %v1569 = vmul.f32 %v1566, %v1568
        %v1570 = vadd.f32 %v1566, %v1569
        %vm1571 = vweird.f32 %v1110
        %vm1572 = vweird.f32 %v1566
        %vm1573 = vmor %vm1571, %vm1572
        %v1574 = vsel %vm1573, %v1566, %v1570
        %v1575 = vand.u32 2147483647, %v1110
        %vm1576 = vcmp.eq.f32.partialorder %v1575, 8.507059e+37
        %v1577 = vand.u32 %v1110, 2147483648
        %v1578 = vor.u32 1.1754944e-38, %v1577
        %v1579 = vsel %vm1576, %v1578, %v1574
        %v1580 = vmul.f32 1.0, %v1579
        %v1581 = vrcp.pop %v1111
        %v1582 = vmul.f32 %v1111, %v1581
        %v1583 = vsub.f32 1.0, %v1582
        %v1584 = vmul.f32 %v1581, %v1583
        %v1585 = vadd.f32 %v1581, %v1584
        %vm1586 = vweird.f32 %v1111
        %vm1587 = vweird.f32 %v1581
        %vm1588 = vmor %vm1586, %vm1587
        %v1589 = vsel %vm1588, %v1581, %v1585
        %v1590 = vand.u32 2147483647, %v1111
        %vm1591 = vcmp.eq.f32.partialorder %v1590, 8.507059e+37
        %v1592 = vand.u32 %v1111, 2147483648
        %v1593 = vor.u32 1.1754944e-38, %v1592
        %v1594 = vsel %vm1591, %v1593, %v1589
        %v1595 = vmul.f32 1.0, %v1594
        %v1596 = vrcp.pop %v1112
        %v1597 = vmul.f32 %v1112, %v1596
        %v1598 = vsub.f32 1.0, %v1597
        %v1599 = vmul.f32 %v1596, %v1598
        %v1600 = vadd.f32 %v1596, %v1599
        %vm1601 = vweird.f32 %v1112
        %vm1602 = vweird.f32 %v1596
        %vm1603 = vmor %vm1601, %vm1602
        %v1604 = vsel %vm1603, %v1596, %v1600
        %v1605 = vand.u32 2147483647, %v1112
        %vm1606 = vcmp.eq.f32.partialorder %v1605, 8.507059e+37
        %v1607 = vand.u32 %v1112, 2147483648
        %v1608 = vor.u32 1.1754944e-38, %v1607
        %v1609 = vsel %vm1606, %v1608, %v1604
        %v1610 = vmul.f32 1.0, %v1609
        %v1611 = vrcp.pop %v1113
        %v1612 = vmul.f32 %v1113, %v1611
        %v1613 = vsub.f32 1.0, %v1612
        %v1614 = vmul.f32 %v1611, %v1613
        %v1615 = vadd.f32 %v1611, %v1614
        %vm1616 = vweird.f32 %v1113
        %vm1617 = vweird.f32 %v1611
        %vm1618 = vmor %vm1616, %vm1617
        %v1619 = vsel %vm1618, %v1611, %v1615
        %v1620 = vand.u32 2147483647, %v1113
        %vm1621 = vcmp.eq.f32.partialorder %v1620, 8.507059e+37
        %v1622 = vand.u32 %v1113, 2147483648
        %v1623 = vor.u32 1.1754944e-38, %v1622
        %v1624 = vsel %vm1621, %v1623, %v1619
        %v1625 = vmul.f32 1.0, %v1624
        %v1626 = vrcp.pop %v1114
        %v1627 = vmul.f32 %v1114, %v1626
        %v1628 = vsub.f32 1.0, %v1627
        %v1629 = vmul.f32 %v1626, %v1628
        %v1630 = vadd.f32 %v1626, %v1629
        %vm1631 = vweird.f32 %v1114
        %vm1632 = vweird.f32 %v1626
        %vm1633 = vmor %vm1631, %vm1632
        %v1634 = vsel %vm1633, %v1626, %v1630
        %v1635 = vand.u32 2147483647, %v1114
        %vm1636 = vcmp.eq.f32.partialorder %v1635, 8.507059e+37
        %v1637 = vand.u32 %v1114, 2147483648
        %v1638 = vor.u32 1.1754944e-38, %v1637
        %v1639 = vsel %vm1636, %v1638, %v1634
        %v1640 = vmul.f32 1.0, %v1639
        %v1641 = vrcp.pop %v1115
        %v1642 = vmul.f32 %v1115, %v1641
        %v1643 = vsub.f32 1.0, %v1642
        %v1644 = vmul.f32 %v1641, %v1643
        %v1645 = vadd.f32 %v1641, %v1644
        %vm1646 = vweird.f32 %v1115
        %vm1647 = vweird.f32 %v1641
        %vm1648 = vmor %vm1646, %vm1647
        %v1649 = vsel %vm1648, %v1641, %v1645
        %v1650 = vand.u32 2147483647, %v1115
        %vm1651 = vcmp.eq.f32.partialorder %v1650, 8.507059e+37
        %v1652 = vand.u32 %v1115, 2147483648
        %v1653 = vor.u32 1.1754944e-38, %v1652
        %v1654 = vsel %vm1651, %v1653, %v1649
        %v1655 = vmul.f32 1.0, %v1654
        %v1656 = vrcp.pop %v1116
        %v1657 = vmul.f32 %v1116, %v1656
        %v1658 = vsub.f32 1.0, %v1657
        %v1659 = vmul.f32 %v1656, %v1658
        %v1660 = vadd.f32 %v1656, %v1659
        %vm1661 = vweird.f32 %v1116
        %vm1662 = vweird.f32 %v1656
        %vm1663 = vmor %vm1661, %vm1662
        %v1664 = vsel %vm1663, %v1656, %v1660
        %v1665 = vand.u32 2147483647, %v1116
        %vm1666 = vcmp.eq.f32.partialorder %v1665, 8.507059e+37
        %v1667 = vand.u32 %v1116, 2147483648
        %v1668 = vor.u32 1.1754944e-38, %v1667
        %v1669 = vsel %vm1666, %v1668, %v1664
        %v1670 = vmul.f32 1.0, %v1669
        %v1671 = vrcp.pop %v1117
        %v1672 = vmul.f32 %v1117, %v1671
        %v1673 = vsub.f32 1.0, %v1672
        %v1674 = vmul.f32 %v1671, %v1673
        %v1675 = vadd.f32 %v1671, %v1674
        %vm1676 = vweird.f32 %v1117
        %vm1677 = vweird.f32 %v1671
        %vm1678 = vmor %vm1676, %vm1677
        %v1679 = vsel %vm1678, %v1671, %v1675
        %v1680 = vand.u32 2147483647, %v1117
        %vm1681 = vcmp.eq.f32.partialorder %v1680, 8.507059e+37
        %v1682 = vand.u32 %v1117, 2147483648
        %v1683 = vor.u32 1.1754944e-38, %v1682
        %v1684 = vsel %vm1681, %v1683, %v1679
        %v1685 = vmul.f32 1.0, %v1684
        %v1686 = vrcp.pop %v1118
        %v1687 = vmul.f32 %v1118, %v1686
        %v1688 = vsub.f32 1.0, %v1687
        %v1689 = vmul.f32 %v1686, %v1688
        %v1690 = vadd.f32 %v1686, %v1689
        %vm1691 = vweird.f32 %v1118
        %vm1692 = vweird.f32 %v1686
        %vm1693 = vmor %vm1691, %vm1692
        %v1694 = vsel %vm1693, %v1686, %v1690
        %v1695 = vand.u32 2147483647, %v1118
        %vm1696 = vcmp.eq.f32.partialorder %v1695, 8.507059e+37
        %v1697 = vand.u32 %v1118, 2147483648
        %v1698 = vor.u32 1.1754944e-38, %v1697
        %v1699 = vsel %vm1696, %v1698, %v1694
        %v1700 = vmul.f32 1.0, %v1699
        %v1701 = vrcp.pop %v1119
        %v1702 = vmul.f32 %v1119, %v1701
        %v1703 = vsub.f32 1.0, %v1702
        %v1704 = vmul.f32 %v1701, %v1703
        %v1705 = vadd.f32 %v1701, %v1704
        %vm1706 = vweird.f32 %v1119
        %vm1707 = vweird.f32 %v1701
        %vm1708 = vmor %vm1706, %vm1707
        %v1709 = vsel %vm1708, %v1701, %v1705
        %v1710 = vand.u32 2147483647, %v1119
        %vm1711 = vcmp.eq.f32.partialorder %v1710, 8.507059e+37
        %v1712 = vand.u32 %v1119, 2147483648
        %v1713 = vor.u32 1.1754944e-38, %v1712
        %v1714 = vsel %vm1711, %v1713, %v1709
        %v1715 = vmul.f32 1.0, %v1714
        %v1716 = vrcp.pop %v1120
        %v1717 = vmul.f32 %v1120, %v1716
        %v1718 = vsub.f32 1.0, %v1717
        %v1719 = vmul.f32 %v1716, %v1718
        %v1720 = vadd.f32 %v1716, %v1719
        %vm1721 = vweird.f32 %v1120
        %vm1722 = vweird.f32 %v1716
        %vm1723 = vmor %vm1721, %vm1722
        %v1724 = vsel %vm1723, %v1716, %v1720
        %v1725 = vand.u32 2147483647, %v1120
        %vm1726 = vcmp.eq.f32.partialorder %v1725, 8.507059e+37
        %v1727 = vand.u32 %v1120, 2147483648
        %v1728 = vor.u32 1.1754944e-38, %v1727
        %v1729 = vsel %vm1726, %v1728, %v1724
        %v1730 = vmul.f32 1.0, %v1729
        %v1731 = vrcp.pop %v1121
        %v1732 = vmul.f32 %v1121, %v1731
        %v1733 = vsub.f32 1.0, %v1732
        %v1734 = vmul.f32 %v1731, %v1733
        %v1735 = vadd.f32 %v1731, %v1734
        %vm1736 = vweird.f32 %v1121
        %vm1737 = vweird.f32 %v1731
        %vm1738 = vmor %vm1736, %vm1737
        %v1739 = vsel %vm1738, %v1731, %v1735
        %v1740 = vand.u32 2147483647, %v1121
        %vm1741 = vcmp.eq.f32.partialorder %v1740, 8.507059e+37
        %v1742 = vand.u32 %v1121, 2147483648
        %v1743 = vor.u32 1.1754944e-38, %v1742
        %v1744 = vsel %vm1741, %v1743, %v1739
        %v1745 = vmul.f32 1.0, %v1744
        %v1746 = vrcp.pop %v1122
        %v1747 = vmul.f32 %v1122, %v1746
        %v1748 = vsub.f32 1.0, %v1747
        %v1749 = vmul.f32 %v1746, %v1748
        %v1750 = vadd.f32 %v1746, %v1749
        %vm1751 = vweird.f32 %v1122
        %vm1752 = vweird.f32 %v1746
        %vm1753 = vmor %vm1751, %vm1752
        %v1754 = vsel %vm1753, %v1746, %v1750
        %v1755 = vand.u32 2147483647, %v1122
        %vm1756 = vcmp.eq.f32.partialorder %v1755, 8.507059e+37
        %v1757 = vand.u32 %v1122, 2147483648
        %v1758 = vor.u32 1.1754944e-38, %v1757
        %v1759 = vsel %vm1756, %v1758, %v1754
        %v1760 = vmul.f32 1.0, %v1759
        %v1761 = vrcp.pop %v1123
        %v1762 = vmul.f32 %v1123, %v1761
        %v1763 = vsub.f32 1.0, %v1762
        %v1764 = vmul.f32 %v1761, %v1763
        %v1765 = vadd.f32 %v1761, %v1764
        %vm1766 = vweird.f32 %v1123
        %vm1767 = vweird.f32 %v1761
        %vm1768 = vmor %vm1766, %vm1767
        %v1769 = vsel %vm1768, %v1761, %v1765
        %v1770 = vand.u32 2147483647, %v1123
        %vm1771 = vcmp.eq.f32.partialorder %v1770, 8.507059e+37
        %v1772 = vand.u32 %v1123, 2147483648
        %v1773 = vor.u32 1.1754944e-38, %v1772
        %v1774 = vsel %vm1771, %v1773, %v1769
        %v1775 = vmul.f32 1.0, %v1774
        %v1776 = vrcp.pop %v1124
        %v1777 = vmul.f32 %v1124, %v1776
        %v1778 = vsub.f32 1.0, %v1777
        %v1779 = vmul.f32 %v1776, %v1778
        %v1780 = vadd.f32 %v1776, %v1779
        %vm1781 = vweird.f32 %v1124
        %vm1782 = vweird.f32 %v1776
        %vm1783 = vmor %vm1781, %vm1782
        %v1784 = vsel %vm1783, %v1776, %v1780
        %v1785 = vand.u32 2147483647, %v1124
        %vm1786 = vcmp.eq.f32.partialorder %v1785, 8.507059e+37
        %v1787 = vand.u32 %v1124, 2147483648
        %v1788 = vor.u32 1.1754944e-38, %v1787
        %v1789 = vsel %vm1786, %v1788, %v1784
        %v1790 = vmul.f32 1.0, %v1789
        %v1791 = vrcp.pop %v1125
        %v1792 = vmul.f32 %v1125, %v1791
        %v1793 = vsub.f32 1.0, %v1792
        %v1794 = vmul.f32 %v1791, %v1793
        %v1795 = vadd.f32 %v1791, %v1794
        %vm1796 = vweird.f32 %v1125
        %vm1797 = vweird.f32 %v1791
        %vm1798 = vmor %vm1796, %vm1797
        %v1799 = vsel %vm1798, %v1791, %v1795
        %v1800 = vand.u32 2147483647, %v1125
        %vm1801 = vcmp.eq.f32.partialorder %v1800, 8.507059e+37
        %v1802 = vand.u32 %v1125, 2147483648
        %v1803 = vor.u32 1.1754944e-38, %v1802
        %v1804 = vsel %vm1801, %v1803, %v1799
        %v1805 = vmul.f32 1.0, %v1804
        %v1806 = vrcp.pop %v1126
        %v1807 = vmul.f32 %v1126, %v1806
        %v1808 = vsub.f32 1.0, %v1807
        %v1809 = vmul.f32 %v1806, %v1808
        %v1810 = vadd.f32 %v1806, %v1809
        %vm1811 = vweird.f32 %v1126
        %vm1812 = vweird.f32 %v1806
        %vm1813 = vmor %vm1811, %vm1812
        %v1814 = vsel %vm1813, %v1806, %v1810
        %v1815 = vand.u32 2147483647, %v1126
        %vm1816 = vcmp.eq.f32.partialorder %v1815, 8.507059e+37
        %v1817 = vand.u32 %v1126, 2147483648
        %v1818 = vor.u32 1.1754944e-38, %v1817
        %v1819 = vsel %vm1816, %v1818, %v1814
        %v1820 = vmul.f32 1.0, %v1819
        %v1821 = vrcp.pop %v1127
        %v1822 = vmul.f32 %v1127, %v1821
        %v1823 = vsub.f32 1.0, %v1822
        %v1824 = vmul.f32 %v1821, %v1823
        %v1825 = vadd.f32 %v1821, %v1824
        %vm1826 = vweird.f32 %v1127
        %vm1827 = vweird.f32 %v1821
        %vm1828 = vmor %vm1826, %vm1827
        %v1829 = vsel %vm1828, %v1821, %v1825
        %v1830 = vand.u32 2147483647, %v1127
        %vm1831 = vcmp.eq.f32.partialorder %v1830, 8.507059e+37
        %v1832 = vand.u32 %v1127, 2147483648
        %v1833 = vor.u32 1.1754944e-38, %v1832
        %v1834 = vsel %vm1831, %v1833, %v1829
        %v1835 = vmul.f32 1.0, %v1834
        %v1836 = vrcp.pop %v1128
        %v1837 = vmul.f32 %v1128, %v1836
        %v1838 = vsub.f32 1.0, %v1837
        %v1839 = vmul.f32 %v1836, %v1838
        %v1840 = vadd.f32 %v1836, %v1839
        %vm1841 = vweird.f32 %v1128
        %vm1842 = vweird.f32 %v1836
        %vm1843 = vmor %vm1841, %vm1842
        %v1844 = vsel %vm1843, %v1836, %v1840
        %v1845 = vand.u32 2147483647, %v1128
        %vm1846 = vcmp.eq.f32.partialorder %v1845, 8.507059e+37
        %v1847 = vand.u32 %v1128, 2147483648
        %v1848 = vor.u32 1.1754944e-38, %v1847
        %v1849 = vsel %vm1846, %v1848, %v1844
        %v1850 = vmul.f32 1.0, %v1849
        %v1851 = vrcp.pop %v1129
        %v1852 = vmul.f32 %v1129, %v1851
        %v1853 = vsub.f32 1.0, %v1852
        %v1854 = vmul.f32 %v1851, %v1853
        %v1855 = vadd.f32 %v1851, %v1854
        %vm1856 = vweird.f32 %v1129
        %vm1857 = vweird.f32 %v1851
        %vm1858 = vmor %vm1856, %vm1857
        %v1859 = vsel %vm1858, %v1851, %v1855
        %v1860 = vand.u32 2147483647, %v1129
        %vm1861 = vcmp.eq.f32.partialorder %v1860, 8.507059e+37
        %v1862 = vand.u32 %v1129, 2147483648
        %v1863 = vor.u32 1.1754944e-38, %v1862
        %v1864 = vsel %vm1861, %v1863, %v1859
        %v1865 = vmul.f32 1.0, %v1864
        %v1866 = vrcp.pop %v1130
        %v1867 = vmul.f32 %v1130, %v1866
        %v1868 = vsub.f32 1.0, %v1867
        %v1869 = vmul.f32 %v1866, %v1868
        %v1870 = vadd.f32 %v1866, %v1869
        %vm1871 = vweird.f32 %v1130
        %vm1872 = vweird.f32 %v1866
        %vm1873 = vmor %vm1871, %vm1872
        %v1874 = vsel %vm1873, %v1866, %v1870
        %v1875 = vand.u32 2147483647, %v1130
        %vm1876 = vcmp.eq.f32.partialorder %v1875, 8.507059e+37
        %v1877 = vand.u32 %v1130, 2147483648
        %v1878 = vor.u32 1.1754944e-38, %v1877
        %v1879 = vsel %vm1876, %v1878, %v1874
        %v1880 = vmul.f32 1.0, %v1879
        %v1881 = vrcp.pop %v1131
        %v1882 = vmul.f32 %v1131, %v1881
        %v1883 = vsub.f32 1.0, %v1882
        %v1884 = vmul.f32 %v1881, %v1883
        %v1885 = vadd.f32 %v1881, %v1884
        %vm1886 = vweird.f32 %v1131
        %vm1887 = vweird.f32 %v1881
        %vm1888 = vmor %vm1886, %vm1887
        %v1889 = vsel %vm1888, %v1881, %v1885
        %v1890 = vand.u32 2147483647, %v1131
        %vm1891 = vcmp.eq.f32.partialorder %v1890, 8.507059e+37
        %v1892 = vand.u32 %v1131, 2147483648
        %v1893 = vor.u32 1.1754944e-38, %v1892
        %v1894 = vsel %vm1891, %v1893, %v1889
        %v1895 = vmul.f32 1.0, %v1894
        %v1896 = vrcp.pop %v1132
        %v1897 = vmul.f32 %v1132, %v1896
        %v1898 = vsub.f32 1.0, %v1897
        %v1899 = vmul.f32 %v1896, %v1898
        %v1900 = vadd.f32 %v1896, %v1899
        %vm1901 = vweird.f32 %v1132
        %vm1902 = vweird.f32 %v1896
        %vm1903 = vmor %vm1901, %vm1902
        %v1904 = vsel %vm1903, %v1896, %v1900
        %v1905 = vand.u32 2147483647, %v1132
        %vm1906 = vcmp.eq.f32.partialorder %v1905, 8.507059e+37
        %v1907 = vand.u32 %v1132, 2147483648
        %v1908 = vor.u32 1.1754944e-38, %v1907
        %v1909 = vsel %vm1906, %v1908, %v1904
        %v1910 = vmul.f32 1.0, %v1909
        %v1911 = vrcp.pop %v1133
        %v1912 = vmul.f32 %v1133, %v1911
        %v1913 = vsub.f32 1.0, %v1912
        %v1914 = vmul.f32 %v1911, %v1913
        %v1915 = vadd.f32 %v1911, %v1914
        %vm1916 = vweird.f32 %v1133
        %vm1917 = vweird.f32 %v1911
        %vm1918 = vmor %vm1916, %vm1917
        %v1919 = vsel %vm1918, %v1911, %v1915
        %v1920 = vand.u32 2147483647, %v1133
        %vm1921 = vcmp.eq.f32.partialorder %v1920, 8.507059e+37
        %v1922 = vand.u32 %v1133, 2147483648
        %v1923 = vor.u32 1.1754944e-38, %v1922
        %v1924 = vsel %vm1921, %v1923, %v1919
        %v1925 = vmul.f32 1.0, %v1924
        %v1926 = vrcp.pop %v1134
        %v1927 = vmul.f32 %v1134, %v1926
        %v1928 = vsub.f32 1.0, %v1927
        %v1929 = vmul.f32 %v1926, %v1928
        %v1930 = vadd.f32 %v1926, %v1929
        %vm1931 = vweird.f32 %v1134
        %vm1932 = vweird.f32 %v1926
        %vm1933 = vmor %vm1931, %vm1932
        %v1934 = vsel %vm1933, %v1926, %v1930
        %v1935 = vand.u32 2147483647, %v1134
        %vm1936 = vcmp.eq.f32.partialorder %v1935, 8.507059e+37
        %v1937 = vand.u32 %v1134, 2147483648
        %v1938 = vor.u32 1.1754944e-38, %v1937
        %v1939 = vsel %vm1936, %v1938, %v1934
        %v1940 = vmul.f32 1.0, %v1939
        %v1941 = vrcp.pop %v1135
        %v1942 = vmul.f32 %v1135, %v1941
        %v1943 = vsub.f32 1.0, %v1942
        %v1944 = vmul.f32 %v1941, %v1943
        %v1945 = vadd.f32 %v1941, %v1944
        %vm1946 = vweird.f32 %v1135
        %vm1947 = vweird.f32 %v1941
        %vm1948 = vmor %vm1946, %vm1947
        %v1949 = vsel %vm1948, %v1941, %v1945
        %v1950 = vand.u32 2147483647, %v1135
        %vm1951 = vcmp.eq.f32.partialorder %v1950, 8.507059e+37
        %v1952 = vand.u32 %v1135, 2147483648
        %v1953 = vor.u32 1.1754944e-38, %v1952
        %v1954 = vsel %vm1951, %v1953, %v1949
        %v1955 = vmul.f32 1.0, %v1954
        %v1956 = vrcp.pop %v1136
        %v1957 = vmul.f32 %v1136, %v1956
        %v1958 = vsub.f32 1.0, %v1957
        %v1959 = vmul.f32 %v1956, %v1958
        %v1960 = vadd.f32 %v1956, %v1959
        %vm1961 = vweird.f32 %v1136
        %vm1962 = vweird.f32 %v1956
        %vm1963 = vmor %vm1961, %vm1962
        %v1964 = vsel %vm1963, %v1956, %v1960
        %v1965 = vand.u32 2147483647, %v1136
        %vm1966 = vcmp.eq.f32.partialorder %v1965, 8.507059e+37
        %v1967 = vand.u32 %v1136, 2147483648
        %v1968 = vor.u32 1.1754944e-38, %v1967
        %v1969 = vsel %vm1966, %v1968, %v1964
        %v1970 = vmul.f32 1.0, %v1969
        %v1971 = vrcp.pop %v1137
        %v1972 = vmul.f32 %v1137, %v1971
        %v1973 = vsub.f32 1.0, %v1972
        %v1974 = vmul.f32 %v1971, %v1973
        %v1975 = vadd.f32 %v1971, %v1974
        %vm1976 = vweird.f32 %v1137
        %vm1977 = vweird.f32 %v1971
        %vm1978 = vmor %vm1976, %vm1977
        %v1979 = vsel %vm1978, %v1971, %v1975
        %v1980 = vand.u32 2147483647, %v1137
        %vm1981 = vcmp.eq.f32.partialorder %v1980, 8.507059e+37
        %v1982 = vand.u32 %v1137, 2147483648
        %v1983 = vor.u32 1.1754944e-38, %v1982
        %v1984 = vsel %vm1981, %v1983, %v1979
        %v1985 = vmul.f32 1.0, %v1984
        %v1986 = vrcp.pop %v1138
        %v1987 = vmul.f32 %v1138, %v1986
        %v1988 = vsub.f32 1.0, %v1987
        %v1989 = vmul.f32 %v1986, %v1988
        %v1990 = vadd.f32 %v1986, %v1989
        %vm1991 = vweird.f32 %v1138
        %vm1992 = vweird.f32 %v1986
        %vm1993 = vmor %vm1991, %vm1992
        %v1994 = vsel %vm1993, %v1986, %v1990
        %v1995 = vand.u32 2147483647, %v1138
        %vm1996 = vcmp.eq.f32.partialorder %v1995, 8.507059e+37
        %v1997 = vand.u32 %v1138, 2147483648
        %v1998 = vor.u32 1.1754944e-38, %v1997
        %v1999 = vsel %vm1996, %v1998, %v1994
        %v2000 = vmul.f32 1.0, %v1999
        %v2001 = vrcp.pop %v1139
        %v2002 = vmul.f32 %v1139, %v2001
        %v2003 = vsub.f32 1.0, %v2002
        %v2004 = vmul.f32 %v2001, %v2003
        %v2005 = vadd.f32 %v2001, %v2004
        %vm2006 = vweird.f32 %v1139
        %vm2007 = vweird.f32 %v2001
        %vm2008 = vmor %vm2006, %vm2007
        %v2009 = vsel %vm2008, %v2001, %v2005
        %v2010 = vand.u32 2147483647, %v1139
        %vm2011 = vcmp.eq.f32.partialorder %v2010, 8.507059e+37
        %v2012 = vand.u32 %v1139, 2147483648
        %v2013 = vor.u32 1.1754944e-38, %v2012
        %v2014 = vsel %vm2011, %v2013, %v2009
        %v2015 = vmul.f32 1.0, %v2014
        %v2016 = vrcp.pop %v1140
        %v2017 = vmul.f32 %v1140, %v2016
        %v2018 = vsub.f32 1.0, %v2017
        %v2019 = vmul.f32 %v2016, %v2018
        %v2020 = vadd.f32 %v2016, %v2019
        %vm2021 = vweird.f32 %v1140
        %vm2022 = vweird.f32 %v2016
        %vm2023 = vmor %vm2021, %vm2022
        %v2024 = vsel %vm2023, %v2016, %v2020
        %v2025 = vand.u32 2147483647, %v1140
        %vm2026 = vcmp.eq.f32.partialorder %v2025, 8.507059e+37
        %v2027 = vand.u32 %v1140, 2147483648
        %v2028 = vor.u32 1.1754944e-38, %v2027
        %v2029 = vsel %vm2026, %v2028, %v2024
        %v2030 = vmul.f32 1.0, %v2029
        %v2031 = vrcp.pop %v1141
        %v2032 = vmul.f32 %v1141, %v2031
        %v2033 = vsub.f32 1.0, %v2032
        %v2034 = vmul.f32 %v2031, %v2033
        %v2035 = vadd.f32 %v2031, %v2034
        %vm2036 = vweird.f32 %v1141
        %vm2037 = vweird.f32 %v2031
        %vm2038 = vmor %vm2036, %vm2037
        %v2039 = vsel %vm2038, %v2031, %v2035
        %v2040 = vand.u32 2147483647, %v1141
        %vm2041 = vcmp.eq.f32.partialorder %v2040, 8.507059e+37
        %v2042 = vand.u32 %v1141, 2147483648
        %v2043 = vor.u32 1.1754944e-38, %v2042
        %v2044 = vsel %vm2041, %v2043, %v2039
        %v2045 = vmul.f32 1.0, %v2044
        %v2046 = vrcp.pop %v1142
        %v2047 = vmul.f32 %v1142, %v2046
        %v2048 = vsub.f32 1.0, %v2047
        %v2049 = vmul.f32 %v2046, %v2048
        %v2050 = vadd.f32 %v2046, %v2049
        %vm2051 = vweird.f32 %v1142
        %vm2052 = vweird.f32 %v2046
        %vm2053 = vmor %vm2051, %vm2052
        %v2054 = vsel %vm2053, %v2046, %v2050
        %v2055 = vand.u32 2147483647, %v1142
        %vm2056 = vcmp.eq.f32.partialorder %v2055, 8.507059e+37
        %v2057 = vand.u32 %v1142, 2147483648
        %v2058 = vor.u32 1.1754944e-38, %v2057
        %v2059 = vsel %vm2056, %v2058, %v2054
        %v2060 = vmul.f32 1.0, %v2059
        %v2061 = vrcp.pop %v1143
        %v2062 = vmul.f32 %v1143, %v2061
        %v2063 = vsub.f32 1.0, %v2062
        %v2064 = vmul.f32 %v2061, %v2063
        %v2065 = vadd.f32 %v2061, %v2064
        %vm2066 = vweird.f32 %v1143
        %vm2067 = vweird.f32 %v2061
        %vm2068 = vmor %vm2066, %vm2067
        %v2069 = vsel %vm2068, %v2061, %v2065
        %v2070 = vand.u32 2147483647, %v1143
        %vm2071 = vcmp.eq.f32.partialorder %v2070, 8.507059e+37
        %v2072 = vand.u32 %v1143, 2147483648
        %v2073 = vor.u32 1.1754944e-38, %v2072
        %v2074 = vsel %vm2071, %v2073, %v2069
        %v2075 = vmul.f32 1.0, %v2074
        %v2076 = vrcp.pop %v1144
        %v2077 = vmul.f32 %v1144, %v2076
        %v2078 = vsub.f32 1.0, %v2077
        %v2079 = vmul.f32 %v2076, %v2078
        %v2080 = vadd.f32 %v2076, %v2079
        %vm2081 = vweird.f32 %v1144
        %vm2082 = vweird.f32 %v2076
        %vm2083 = vmor %vm2081, %vm2082
        %v2084 = vsel %vm2083, %v2076, %v2080
        %v2085 = vand.u32 2147483647, %v1144
        %vm2086 = vcmp.eq.f32.partialorder %v2085, 8.507059e+37
        %v2087 = vand.u32 %v1144, 2147483648
        %v2088 = vor.u32 1.1754944e-38, %v2087
        %v2089 = vsel %vm2086, %v2088, %v2084
        %v2090 = vmul.f32 1.0, %v2089
        %v2091 = vrcp.pop %v1145
        %v2092 = vmul.f32 %v1145, %v2091
        %v2093 = vsub.f32 1.0, %v2092
        %v2094 = vmul.f32 %v2091, %v2093
        %v2095 = vadd.f32 %v2091, %v2094
        %vm2096 = vweird.f32 %v1145
        %vm2097 = vweird.f32 %v2091
        %vm2098 = vmor %vm2096, %vm2097
        %v2099 = vsel %vm2098, %v2091, %v2095
        %v2100 = vand.u32 2147483647, %v1145
        %vm2101 = vcmp.eq.f32.partialorder %v2100, 8.507059e+37
        %v2102 = vand.u32 %v1145, 2147483648
        %v2103 = vor.u32 1.1754944e-38, %v2102
        %v2104 = vsel %vm2101, %v2103, %v2099
        %v2105 = vmul.f32 1.0, %v2104
        %v2106 = vmul.f32 %v388, %v1160
        %v2107 = vmul.f32 %v453, %v1175
        %v2108 = vmul.f32 %v518, %v1190
        %v2109 = vmul.f32 %v583, %v1205
        %v2110 = vmul.f32 %v391, %v1220
        %v2111 = vmul.f32 %v456, %v1235
        %v2112 = vmul.f32 %v521, %v1250
        %v2113 = vmul.f32 %v586, %v1265
        %v2114 = vmul.f32 %v394, %v1280
        %v2115 = vmul.f32 %v459, %v1295
        %v2116 = vmul.f32 %v524, %v1310
        %v2117 = vmul.f32 %v589, %v1325
        %v2118 = vmul.f32 %v397, %v1340
        %v2119 = vmul.f32 %v462, %v1355
        %v2120 = vmul.f32 %v527, %v1370
        %v2121 = vmul.f32 %v592, %v1385
        %v2122 = vmul.f32 %v400, %v1400
        %v2123 = vmul.f32 %v465, %v1415
        %v2124 = vmul.f32 %v530, %v1430
        %v2125 = vmul.f32 %v595, %v1445
        %v2126 = vmul.f32 %v403, %v1460
        %v2127 = vmul.f32 %v468, %v1475
        %v2128 = vmul.f32 %v533, %v1490
        %v2129 = vmul.f32 %v598, %v1505
        %v2130 = vmul.f32 %v406, %v1520
        %v2131 = vmul.f32 %v471, %v1535
        %v2132 = vmul.f32 %v536, %v1550
        %v2133 = vmul.f32 %v601, %v1565
        %v2134 = vmul.f32 %v409, %v1580
        %v2135 = vmul.f32 %v474, %v1595
        %v2136 = vmul.f32 %v539, %v1610
        %v2137 = vmul.f32 %v604, %v1625
        %v2138 = vmul.f32 %v412, %v1640
        %v2139 = vmul.f32 %v477, %v1655
        %v2140 = vmul.f32 %v542, %v1670
        %v2141 = vmul.f32 %v607, %v1685
        %v2142 = vmul.f32 %v415, %v1700
        %v2143 = vmul.f32 %v480, %v1715
        %v2144 = vmul.f32 %v545, %v1730
        %v2145 = vmul.f32 %v610, %v1745
        %v2146 = vmul.f32 %v418, %v1760
        %v2147 = vmul.f32 %v483, %v1775
        %v2148 = vmul.f32 %v548, %v1790
        %v2149 = vmul.f32 %v613, %v1805
        %v2150 = vmul.f32 %v421, %v1820
        %v2151 = vmul.f32 %v486, %v1835
        %v2152 = vmul.f32 %v551, %v1850
        %v2153 = vmul.f32 %v616, %v1865
        %v2154 = vmul.f32 %v424, %v1880
        %v2155 = vmul.f32 %v489, %v1895
        %v2156 = vmul.f32 %v554, %v1910
        %v2157 = vmul.f32 %v619, %v1925
        %v2158 = vmul.f32 %v427, %v1940
        %v2159 = vmul.f32 %v492, %v1955
        %v2160 = vmul.f32 %v557, %v1970
        %v2161 = vmul.f32 %v622, %v1985
        %v2162 = vmul.f32 %v430, %v2000
        %v2163 = vmul.f32 %v495, %v2015
        %v2164 = vmul.f32 %v560, %v2030
        %v2165 = vmul.f32 %v625, %v2045
        %v2166 = vmul.f32 %v433, %v2060
        %v2167 = vmul.f32 %v498, %v2075
        %v2168 = vmul.f32 %v563, %v2090
        %v2169 = vmul.f32 %v628, %v2105
        %v2170 = vmul.f32 %v2106, %v648
        %v2171 = vmul.f32 %v2107, %v713
        %v2172 = vmul.f32 %v2108, %v778
        %v2173 = vmul.f32 %v2109, %v843
        %v2174 = vmul.f32 %v2110, %v651
        %v2175 = vmul.f32 %v2111, %v716
        %v2176 = vmul.f32 %v2112, %v781
        %v2177 = vmul.f32 %v2113, %v846
        %v2178 = vmul.f32 %v2114, %v654
        %v2179 = vmul.f32 %v2115, %v719
        %v2180 = vmul.f32 %v2116, %v784
        %v2181 = vmul.f32 %v2117, %v849
        %v2182 = vmul.f32 %v2118, %v657
        %v2183 = vmul.f32 %v2119, %v722
        %v2184 = vmul.f32 %v2120, %v787
        %v2185 = vmul.f32 %v2121, %v852
        %v2186 = vmul.f32 %v2122, %v660
        %v2187 = vmul.f32 %v2123, %v725
        %v2188 = vmul.f32 %v2124, %v790
        %v2189 = vmul.f32 %v2125, %v855
        %v2190 = vmul.f32 %v2126, %v663
        %v2191 = vmul.f32 %v2127, %v728
        %v2192 = vmul.f32 %v2128, %v793
        %v2193 = vmul.f32 %v2129, %v858
        %v2194 = vmul.f32 %v2130, %v666
        %v2195 = vmul.f32 %v2131, %v731
        %v2196 = vmul.f32 %v2132, %v796
        %v2197 = vmul.f32 %v2133, %v861
        %v2198 = vmul.f32 %v2134, %v669
        %v2199 = vmul.f32 %v2135, %v734
        %v2200 = vmul.f32 %v2136, %v799
        %v2201 = vmul.f32 %v2137, %v864
        %v2202 = vmul.f32 %v2138, %v672
        %v2203 = vmul.f32 %v2139, %v737
        %v2204 = vmul.f32 %v2140, %v802
        %v2205 = vmul.f32 %v2141, %v867
        %v2206 = vmul.f32 %v2142, %v675
        %v2207 = vmul.f32 %v2143, %v740
        %v2208 = vmul.f32 %v2144, %v805
        %v2209 = vmul.f32 %v2145, %v870
        %v2210 = vmul.f32 %v2146, %v678
        %v2211 = vmul.f32 %v2147, %v743
        %v2212 = vmul.f32 %v2148, %v808
        %v2213 = vmul.f32 %v2149, %v873
        %v2214 = vmul.f32 %v2150, %v681
        %v2215 = vmul.f32 %v2151, %v746
        %v2216 = vmul.f32 %v2152, %v811
        %v2217 = vmul.f32 %v2153, %v876
        %v2218 = vmul.f32 %v2154, %v684
        %v2219 = vmul.f32 %v2155, %v749
        %v2220 = vmul.f32 %v2156, %v814
        %v2221 = vmul.f32 %v2157, %v879
        %v2222 = vmul.f32 %v2158, %v687
        %v2223 = vmul.f32 %v2159, %v752
        %v2224 = vmul.f32 %v2160, %v817
        %v2225 = vmul.f32 %v2161, %v882
        %v2226 = vmul.f32 %v2162, %v690
        %v2227 = vmul.f32 %v2163, %v755
        %v2228 = vmul.f32 %v2164, %v820
        %v2229 = vmul.f32 %v2165, %v885
        %v2230 = vmul.f32 %v2166, %v693
        %v2231 = vmul.f32 %v2167, %v758
        %v2232 = vmul.f32 %v2168, %v823
        %v2233 = vmul.f32 %v2169, %v888
        %v2234 = vld [vmem:[#allocation7] sm:$0xff]
        %v2235 = vld [vmem:[#allocation7 + $0x8] sm:$0xff]
        %v2236 = vld [vmem:[#allocation7 + $0x10] sm:$0xff]
        %v2237 = vld [vmem:[#allocation7 + $0x18] sm:$0xff]
        %v2238 = vld [vmem:[#allocation7 + $0x20] sm:$0xff]
        %v2239 = vld [vmem:[#allocation7 + $0x28] sm:$0xff]
        %v2240 = vld [vmem:[#allocation7 + $0x30] sm:$0xff]
        %v2241 = vld [vmem:[#allocation7 + $0x38] sm:$0xff]
        %v2242 = vld [vmem:[#allocation7 + $0x40] sm:$0xff]
        %v2243 = vld [vmem:[#allocation7 + $0x48] sm:$0xff]
        %v2244 = vld [vmem:[#allocation7 + $0x50] sm:$0xff]
        %v2245 = vld [vmem:[#allocation7 + $0x58] sm:$0xff]
        %v2246 = vld [vmem:[#allocation7 + $0x60] sm:$0xff]
        %v2247 = vld [vmem:[#allocation7 + $0x68] sm:$0xff]
        %v2248 = vld [vmem:[#allocation7 + $0x70] sm:$0xff]
        %v2249 = vld [vmem:[#allocation7 + $0x78] sm:$0xff]
        %v2250 = vld [vmem:[#allocation7 + $0x80] sm:$0xff]
        %v2251 = vld [vmem:[#allocation7 + $0x88] sm:$0xff]
        %v2252 = vld [vmem:[#allocation7 + $0x90] sm:$0xff]
        %v2253 = vld [vmem:[#allocation7 + $0x98] sm:$0xff]
        %v2254 = vld [vmem:[#allocation7 + $0xa0] sm:$0xff]
        %v2255 = vld [vmem:[#allocation7 + $0xa8] sm:$0xff]
        %v2256 = vld [vmem:[#allocation7 + $0xb0] sm:$0xff]
        %v2257 = vld [vmem:[#allocation7 + $0xb8] sm:$0xff]
        %v2258 = vld [vmem:[#allocation7 + $0xc0] sm:$0xff]
        %v2259 = vld [vmem:[#allocation7 + $0xc8] sm:$0xff]
        %v2260 = vld [vmem:[#allocation7 + $0xd0] sm:$0xff]
        %v2261 = vld [vmem:[#allocation7 + $0xd8] sm:$0xff]
        %v2262 = vld [vmem:[#allocation7 + $0xe0] sm:$0xff]
        %v2263 = vld [vmem:[#allocation7 + $0xe8] sm:$0xff]
        %v2264 = vld [vmem:[#allocation7 + $0xf0] sm:$0xff]
        %v2265 = vld [vmem:[#allocation7 + $0xf8] sm:$0xff]
        %v2266 = vld [vmem:[#allocation7 + $0x100] sm:$0xff]
        %v2267 = vld [vmem:[#allocation7 + $0x108] sm:$0xff]
        %v2268 = vld [vmem:[#allocation7 + $0x110] sm:$0xff]
        %v2269 = vld [vmem:[#allocation7 + $0x118] sm:$0xff]
        %v2270 = vld [vmem:[#allocation7 + $0x120] sm:$0xff]
        %v2271 = vld [vmem:[#allocation7 + $0x128] sm:$0xff]
        %v2272 = vld [vmem:[#allocation7 + $0x130] sm:$0xff]
        %v2273 = vld [vmem:[#allocation7 + $0x138] sm:$0xff]
        %v2274 = vld [vmem:[#allocation7 + $0x140] sm:$0xff]
        %v2275 = vld [vmem:[#allocation7 + $0x148] sm:$0xff]
        %v2276 = vld [vmem:[#allocation7 + $0x150] sm:$0xff]
        %v2277 = vld [vmem:[#allocation7 + $0x158] sm:$0xff]
        %v2278 = vld [vmem:[#allocation7 + $0x160] sm:$0xff]
        %v2279 = vld [vmem:[#allocation7 + $0x168] sm:$0xff]
        %v2280 = vld [vmem:[#allocation7 + $0x170] sm:$0xff]
        %v2281 = vld [vmem:[#allocation7 + $0x178] sm:$0xff]
        %v2282 = vld [vmem:[#allocation7 + $0x180] sm:$0xff]
        %v2283 = vld [vmem:[#allocation7 + $0x188] sm:$0xff]
        %v2284 = vld [vmem:[#allocation7 + $0x190] sm:$0xff]
        %v2285 = vld [vmem:[#allocation7 + $0x198] sm:$0xff]
        %v2286 = vld [vmem:[#allocation7 + $0x1a0] sm:$0xff]
        %v2287 = vld [vmem:[#allocation7 + $0x1a8] sm:$0xff]
        %v2288 = vld [vmem:[#allocation7 + $0x1b0] sm:$0xff]
        %v2289 = vld [vmem:[#allocation7 + $0x1b8] sm:$0xff]
        %v2290 = vld [vmem:[#allocation7 + $0x1c0] sm:$0xff]
        %v2291 = vld [vmem:[#allocation7 + $0x1c8] sm:$0xff]
        %v2292 = vld [vmem:[#allocation7 + $0x1d0] sm:$0xff]
        %v2293 = vld [vmem:[#allocation7 + $0x1d8] sm:$0xff]
        %v2294 = vld [vmem:[#allocation7 + $0x1e0] sm:$0xff]
        %v2295 = vld [vmem:[#allocation7 + $0x1e8] sm:$0xff]
        %v2296 = vld [vmem:[#allocation7 + $0x1f0] sm:$0xff]
        %v2297 = vld [vmem:[#allocation7 + $0x1f8] sm:$0xff]
        %2298 = vmatpush.msra.mxu0 %v2249
        %2299 = vmatpush.msra.mxu0 %v2248
        %2300 = vmatpush.msra.mxu0 %v2247
        %2301 = vmatpush.msra.mxu0 %v2246
        %2302 = vmatpush.msra.mxu0 %v2245
        %2303 = vmatpush.msra.mxu0 %v2244
        %2304 = vmatpush.msra.mxu0 %v2243
        %2305 = vmatpush.msra.mxu0 %v2242
        %2306 = vmatpush.msra.mxu0 %v2241
        %2307 = vmatpush.msra.mxu0 %v2240
        %2308 = vmatpush.msra.mxu0 %v2239
        %2309 = vmatpush.msra.mxu0 %v2238
        %2310 = vmatpush.msra.mxu0 %v2237
        %2311 = vmatpush.msra.mxu0 %v2236
        %2312 = vmatpush.msra.mxu0 %v2235
        %2313 = vmatpush.msra.mxu0 %v2234
        %2314 = vmatmul.f32.gmra.mxu0 %v2170
        %v2315 = vpop.f32.mrf.mxu0
        %v2316 = vadd.f32 0.0, %v2315
        %2317 = vmatmul.f32.gmra.mxu0 %v2174
        %v2318 = vpop.f32.mrf.mxu0
        %v2319 = vadd.f32 0.0, %v2318
        %2320 = vmatmul.f32.gmra.mxu0 %v2178
        %v2321 = vpop.f32.mrf.mxu0
        %v2322 = vadd.f32 0.0, %v2321
        %2323 = vmatmul.f32.gmra.mxu0 %v2182
        %v2324 = vpop.f32.mrf.mxu0
        %v2325 = vadd.f32 0.0, %v2324
        %2326 = vmatmul.f32.gmra.mxu0 %v2186
        %v2327 = vpop.f32.mrf.mxu0
        %v2328 = vadd.f32 0.0, %v2327
        %2329 = vmatmul.f32.gmra.mxu0 %v2190
        %v2330 = vpop.f32.mrf.mxu0
        %v2331 = vadd.f32 0.0, %v2330
        %2332 = vmatmul.f32.gmra.mxu0 %v2194
        %v2333 = vpop.f32.mrf.mxu0
        %v2334 = vadd.f32 0.0, %v2333
        %2335 = vmatmul.f32.gmra.mxu0 %v2198
        %v2336 = vpop.f32.mrf.mxu0
        %v2337 = vadd.f32 0.0, %v2336
        %2338 = vmatmul.f32.gmra.mxu0 %v2202
        %v2339 = vpop.f32.mrf.mxu0
        %v2340 = vadd.f32 0.0, %v2339
        %2341 = vmatmul.f32.gmra.mxu0 %v2206
        %v2342 = vpop.f32.mrf.mxu0
        %v2343 = vadd.f32 0.0, %v2342
        %2344 = vmatmul.f32.gmra.mxu0 %v2210
        %v2345 = vpop.f32.mrf.mxu0
        %v2346 = vadd.f32 0.0, %v2345
        %2347 = vmatmul.f32.gmra.mxu0 %v2214
        %v2348 = vpop.f32.mrf.mxu0
        %v2349 = vadd.f32 0.0, %v2348
        %2350 = vmatmul.f32.gmra.mxu0 %v2218
        %v2351 = vpop.f32.mrf.mxu0
        %v2352 = vadd.f32 0.0, %v2351
        %2353 = vmatmul.f32.gmra.mxu0 %v2222
        %v2354 = vpop.f32.mrf.mxu0
        %v2355 = vadd.f32 0.0, %v2354
        %2356 = vmatmul.f32.gmra.mxu0 %v2226
        %v2357 = vpop.f32.mrf.mxu0
        %v2358 = vadd.f32 0.0, %v2357
        %2359 = vmatmul.f32.gmra.mxu0 %v2230
        %v2360 = vpop.f32.mrf.mxu0
        %v2361 = vadd.f32 0.0, %v2360
        %2362 = vdwg.mxu0
        %2363 = vmatpush.msra.mxu0 %v2265
        %2364 = vmatpush.msra.mxu0 %v2264
        %2365 = vmatpush.msra.mxu0 %v2263
        %2366 = vmatpush.msra.mxu0 %v2262
        %2367 = vmatpush.msra.mxu0 %v2261
        %2368 = vmatpush.msra.mxu0 %v2260
        %2369 = vmatpush.msra.mxu0 %v2259
        %2370 = vmatpush.msra.mxu0 %v2258
        %2371 = vmatpush.msra.mxu0 %v2257
        %2372 = vmatpush.msra.mxu0 %v2256
        %2373 = vmatpush.msra.mxu0 %v2255
        %2374 = vmatpush.msra.mxu0 %v2254
        %2375 = vmatpush.msra.mxu0 %v2253
        %2376 = vmatpush.msra.mxu0 %v2252
        %2377 = vmatpush.msra.mxu0 %v2251
        %2378 = vmatpush.msra.mxu0 %v2250
        %2379 = vmatmul.f32.gmra.mxu0 %v2171
        %v2380 = vpop.f32.mrf.mxu0
        %v2381 = vadd.f32 %v2316, %v2380
        %2382 = vmatmul.f32.gmra.mxu0 %v2175
        %v2383 = vpop.f32.mrf.mxu0
        %v2384 = vadd.f32 %v2319, %v2383
        %2385 = vmatmul.f32.gmra.mxu0 %v2179
        %v2386 = vpop.f32.mrf.mxu0
        %v2387 = vadd.f32 %v2322, %v2386
        %2388 = vmatmul.f32.gmra.mxu0 %v2183
        %v2389 = vpop.f32.mrf.mxu0
        %v2390 = vadd.f32 %v2325, %v2389
        %2391 = vmatmul.f32.gmra.mxu0 %v2187
        %v2392 = vpop.f32.mrf.mxu0
        %v2393 = vadd.f32 %v2328, %v2392
        %2394 = vmatmul.f32.gmra.mxu0 %v2191
        %v2395 = vpop.f32.mrf.mxu0
        %v2396 = vadd.f32 %v2331, %v2395
        %2397 = vmatmul.f32.gmra.mxu0 %v2195
        %v2398 = vpop.f32.mrf.mxu0
        %v2399 = vadd.f32 %v2334, %v2398
        %2400 = vmatmul.f32.gmra.mxu0 %v2199
        %v2401 = vpop.f32.mrf.mxu0
        %v2402 = vadd.f32 %v2337, %v2401
        %2403 = vmatmul.f32.gmra.mxu0 %v2203
        %v2404 = vpop.f32.mrf.mxu0
        %v2405 = vadd.f32 %v2340, %v2404
        %2406 = vmatmul.f32.gmra.mxu0 %v2207
        %v2407 = vpop.f32.mrf.mxu0
        %v2408 = vadd.f32 %v2343, %v2407
        %2409 = vmatmul.f32.gmra.mxu0 %v2211
        %v2410 = vpop.f32.mrf.mxu0
        %v2411 = vadd.f32 %v2346, %v2410
        %2412 = vmatmul.f32.gmra.mxu0 %v2215
        %v2413 = vpop.f32.mrf.mxu0
        %v2414 = vadd.f32 %v2349, %v2413
        %2415 = vmatmul.f32.gmra.mxu0 %v2219
        %v2416 = vpop.f32.mrf.mxu0
        %v2417 = vadd.f32 %v2352, %v2416
        %2418 = vmatmul.f32.gmra.mxu0 %v2223
        %v2419 = vpop.f32.mrf.mxu0
        %v2420 = vadd.f32 %v2355, %v2419
        %2421 = vmatmul.f32.gmra.mxu0 %v2227
        %v2422 = vpop.f32.mrf.mxu0
        %v2423 = vadd.f32 %v2358, %v2422
        %2424 = vmatmul.f32.gmra.mxu0 %v2231
        %v2425 = vpop.f32.mrf.mxu0
        %v2426 = vadd.f32 %v2361, %v2425
        %2427 = vdwg.mxu0
        %2428 = vmatpush.msra.mxu0 %v2281
        %2429 = vmatpush.msra.mxu0 %v2280
        %2430 = vmatpush.msra.mxu0 %v2279
        %2431 = vmatpush.msra.mxu0 %v2278
        %2432 = vmatpush.msra.mxu0 %v2277
        %2433 = vmatpush.msra.mxu0 %v2276
        %2434 = vmatpush.msra.mxu0 %v2275
        %2435 = vmatpush.msra.mxu0 %v2274
        %2436 = vmatpush.msra.mxu0 %v2273
        %2437 = vmatpush.msra.mxu0 %v2272
        %2438 = vmatpush.msra.mxu0 %v2271
        %2439 = vmatpush.msra.mxu0 %v2270
        %2440 = vmatpush.msra.mxu0 %v2269
        %2441 = vmatpush.msra.mxu0 %v2268
        %2442 = vmatpush.msra.mxu0 %v2267
        %2443 = vmatpush.msra.mxu0 %v2266
        %2444 = vmatmul.f32.gmra.mxu0 %v2172
        %v2445 = vpop.f32.mrf.mxu0
        %v2446 = vadd.f32 %v2381, %v2445
        %2447 = vmatmul.f32.gmra.mxu0 %v2176
        %v2448 = vpop.f32.mrf.mxu0
        %v2449 = vadd.f32 %v2384, %v2448
        %2450 = vmatmul.f32.gmra.mxu0 %v2180
        %v2451 = vpop.f32.mrf.mxu0
        %v2452 = vadd.f32 %v2387, %v2451
        %2453 = vmatmul.f32.gmra.mxu0 %v2184
        %v2454 = vpop.f32.mrf.mxu0
        %v2455 = vadd.f32 %v2390, %v2454
        %2456 = vmatmul.f32.gmra.mxu0 %v2188
        %v2457 = vpop.f32.mrf.mxu0
        %v2458 = vadd.f32 %v2393, %v2457
        %2459 = vmatmul.f32.gmra.mxu0 %v2192
        %v2460 = vpop.f32.mrf.mxu0
        %v2461 = vadd.f32 %v2396, %v2460
        %2462 = vmatmul.f32.gmra.mxu0 %v2196
        %v2463 = vpop.f32.mrf.mxu0
        %v2464 = vadd.f32 %v2399, %v2463
        %2465 = vmatmul.f32.gmra.mxu0 %v2200
        %v2466 = vpop.f32.mrf.mxu0
        %v2467 = vadd.f32 %v2402, %v2466
        %2468 = vmatmul.f32.gmra.mxu0 %v2204
        %v2469 = vpop.f32.mrf.mxu0
        %v2470 = vadd.f32 %v2405, %v2469
        %2471 = vmatmul.f32.gmra.mxu0 %v2208
        %v2472 = vpop.f32.mrf.mxu0
        %v2473 = vadd.f32 %v2408, %v2472
        %2474 = vmatmul.f32.gmra.mxu0 %v2212
        %v2475 = vpop.f32.mrf.mxu0
        %v2476 = vadd.f32 %v2411, %v2475
        %2477 = vmatmul.f32.gmra.mxu0 %v2216
        %v2478 = vpop.f32.mrf.mxu0
        %v2479 = vadd.f32 %v2414, %v2478
        %2480 = vmatmul.f32.gmra.mxu0 %v2220
        %v2481 = vpop.f32.mrf.mxu0
        %v2482 = vadd.f32 %v2417, %v2481
        %2483 = vmatmul.f32.gmra.mxu0 %v2224
        %v2484 = vpop.f32.mrf.mxu0
        %v2485 = vadd.f32 %v2420, %v2484
        %2486 = vmatmul.f32.gmra.mxu0 %v2228
        %v2487 = vpop.f32.mrf.mxu0
        %v2488 = vadd.f32 %v2423, %v2487
        %2489 = vmatmul.f32.gmra.mxu0 %v2232
        %v2490 = vpop.f32.mrf.mxu0
        %v2491 = vadd.f32 %v2426, %v2490
        %2492 = vdwg.mxu0
        %2493 = vmatpush.msra.mxu0 %v2297
        %2494 = vmatpush.msra.mxu0 %v2296
        %2495 = vmatpush.msra.mxu0 %v2295
        %2496 = vmatpush.msra.mxu0 %v2294
        %2497 = vmatpush.msra.mxu0 %v2293
        %2498 = vmatpush.msra.mxu0 %v2292
        %2499 = vmatpush.msra.mxu0 %v2291
        %2500 = vmatpush.msra.mxu0 %v2290
        %2501 = vmatpush.msra.mxu0 %v2289
        %2502 = vmatpush.msra.mxu0 %v2288
        %2503 = vmatpush.msra.mxu0 %v2287
        %2504 = vmatpush.msra.mxu0 %v2286
        %2505 = vmatpush.msra.mxu0 %v2285
        %2506 = vmatpush.msra.mxu0 %v2284
        %2507 = vmatpush.msra.mxu0 %v2283
        %2508 = vmatpush.msra.mxu0 %v2282
        %2509 = vmatmul.f32.gmra.mxu0 %v2173
        %v2510 = vpop.f32.mrf.mxu0
        %v2511 = vadd.f32 %v2446, %v2510
        %2512 = vmatmul.f32.gmra.mxu0 %v2177
        %v2513 = vpop.f32.mrf.mxu0
        %v2514 = vadd.f32 %v2449, %v2513
        %2515 = vmatmul.f32.gmra.mxu0 %v2181
        %v2516 = vpop.f32.mrf.mxu0
        %v2517 = vadd.f32 %v2452, %v2516
        %2518 = vmatmul.f32.gmra.mxu0 %v2185
        %v2519 = vpop.f32.mrf.mxu0
        %v2520 = vadd.f32 %v2455, %v2519
        %2521 = vmatmul.f32.gmra.mxu0 %v2189
        %v2522 = vpop.f32.mrf.mxu0
        %v2523 = vadd.f32 %v2458, %v2522
        %2524 = vmatmul.f32.gmra.mxu0 %v2193
        %v2525 = vpop.f32.mrf.mxu0
        %v2526 = vadd.f32 %v2461, %v2525
        %2527 = vmatmul.f32.gmra.mxu0 %v2197
        %v2528 = vpop.f32.mrf.mxu0
        %v2529 = vadd.f32 %v2464, %v2528
        %2530 = vmatmul.f32.gmra.mxu0 %v2201
        %v2531 = vpop.f32.mrf.mxu0
        %v2532 = vadd.f32 %v2467, %v2531
        %2533 = vmatmul.f32.gmra.mxu0 %v2205
        %v2534 = vpop.f32.mrf.mxu0
        %v2535 = vadd.f32 %v2470, %v2534
        %2536 = vmatmul.f32.gmra.mxu0 %v2209
        %v2537 = vpop.f32.mrf.mxu0
        %v2538 = vadd.f32 %v2473, %v2537
        %2539 = vmatmul.f32.gmra.mxu0 %v2213
        %v2540 = vpop.f32.mrf.mxu0
        %v2541 = vadd.f32 %v2476, %v2540
        %2542 = vmatmul.f32.gmra.mxu0 %v2217
        %v2543 = vpop.f32.mrf.mxu0
        %v2544 = vadd.f32 %v2479, %v2543
        %2545 = vmatmul.f32.gmra.mxu0 %v2221
        %v2546 = vpop.f32.mrf.mxu0
        %v2547 = vadd.f32 %v2482, %v2546
        %2548 = vmatmul.f32.gmra.mxu0 %v2225
        %v2549 = vpop.f32.mrf.mxu0
        %v2550 = vadd.f32 %v2485, %v2549
        %2551 = vmatmul.f32.gmra.mxu0 %v2229
        %v2552 = vpop.f32.mrf.mxu0
        %v2553 = vadd.f32 %v2488, %v2552
        %2554 = vmatmul.f32.gmra.mxu0 %v2233
        %v2555 = vpop.f32.mrf.mxu0
        %v2556 = vadd.f32 %v2491, %v2555
        %2557 = vdwg.mxu0
        %2558 = vst [vmem:[%s223] sm:$0xff] %v2511
        %2559 = vst [vmem:[%s223 + $0x8] sm:$0xff] %v2514
        %2560 = vst [vmem:[%s223 + $0x10] sm:$0xff] %v2517
        %2561 = vst [vmem:[%s223 + $0x18] sm:$0xff] %v2520
        %2562 = vst [vmem:[%s223 + $0x20] sm:$0xff] %v2523
        %2563 = vst [vmem:[%s223 + $0x28] sm:$0xff] %v2526
        %2564 = vst [vmem:[%s223 + $0x30] sm:$0xff] %v2529
        %2565 = vst [vmem:[%s223 + $0x38] sm:$0xff] %v2532
        %2566 = vst [vmem:[%s223 + $0x40] sm:$0xff] %v2535
        %2567 = vst [vmem:[%s223 + $0x48] sm:$0xff] %v2538
        %2568 = vst [vmem:[%s223 + $0x50] sm:$0xff] %v2541
        %2569 = vst [vmem:[%s223 + $0x58] sm:$0xff] %v2544
        %2570 = vst [vmem:[%s223 + $0x60] sm:$0xff] %v2547
        %2571 = vst [vmem:[%s223 + $0x68] sm:$0xff] %v2550
        %2572 = vst [vmem:[%s223 + $0x70] sm:$0xff] %v2553
        %2573 = vst [vmem:[%s223 + $0x78] sm:$0xff] %v2556
        %s2574 = sand.u32 %s97, 1
        %s2575 = scalar_lea.sflag [#allocation4], %s2574
        %s2576 = sand.u32 %s97, 1
        %s2577 = smul.addr %s2576, 128
        %s2578 = scalar_lea.vmem [#allocation8], %s2577
        // Predicated region
        $region45: #{feed_forward.1} parent=31 // pred_check
          %p2579 = pneg %p107
        $region46: #{feed_forward.1} parent=31 // pred_check_branch
          %2581 = sbr.rel (%p2579) target = $region48
        $region47: #{feed_forward.1} parent=31 // pred_region
          %s2582 = smul.u32 16, %s21
          %2584 = vsyncadd %s2575, 0
          %s2585 = smul.addr %s2582, 8
          %s2586 = scalar_lea.hbm %s3, %s2585
          %s2587 = sshll.u32 %s2578, 4
          %s2588 = int_to_ptr.vmem [resolvable:$true] %s2587
          %s2589 = sshll.u32 %s2586, 4
          %s2590 = int_to_ptr.hbm [resolvable:$true] %s2589
          %2595 = dma.vmem_to_hbm [thread:$0]  %s2588, 2048, %s2590, %s2575, 128, 128, 8
        $region48: #{feed_forward.1} parent=31 // pred_fallthru
          _
      $region32: #{feed_forward.1} parent=5 // pred_fallthru
        _
      %p2596 = scmp.le.s32.totalorder 2, %s16
      // Predicated region
      $region49: #{feed_forward.1} parent=5 // pred_check
        %p2597 = pneg %p2596
      $region50: #{feed_forward.1} parent=5 // pred_check_branch
        %2599 = sbr.rel (%p2597) target = $region52
      $region51: #{feed_forward.1} parent=5 // pred_region
        %s2600 = ssub.s32 %s16, 2
        // Predicated region
        $region53: #{feed_forward.1} parent=51 // pred_check
          %p2601 = pneg %p113
        $region54: #{feed_forward.1} parent=51 // pred_check_branch
          %2603 = sbr.rel (%p2601) target = $region56
        $region55: #{feed_forward.1} parent=51 // pred_region
          %s2604 = sand.u32 %s98, 1
          %s2605 = scalar_lea.sflag [#allocation4], %s2604
          %s2606 = sand.u32 %s98, 1
          %s2607 = smul.addr %s2606, 128
          %s2608 = scalar_lea.vmem [#allocation8], %s2607
          %2610 = dma.done %s2605, 2048
        $region56: #{feed_forward.1} parent=51 // pred_fallthru
          _
      $region52: #{feed_forward.1} parent=5 // pred_fallthru
        _
    $region6: #{feed_forward.1} parent=1 // loop_footer
      %s20 = sadd.s32 1, %s16
    $region7: #{feed_forward.1} parent=1 // loop_footer_branch
      %15 = sbr.rel target = $region3
    $region8: #{feed_forward.1} parent=1 // loop_exit
      _
    %2611 = vsyncpa [#allocation3], 1
    %s2612 = scalar_lea.sflag [#allocation3], 1
    %2613 = vsyncpa %s2612, 1
    %2614 = vsyncpa [#allocation6], 1
    %2615 = vsyncpa [#allocation4], 1
    %s2616 = scalar_lea.sflag [#allocation4], 1
    %2617 = vsyncpa %s2616, 1

</llo_original>
